<compile_context>
chip_gen: v6e
topology: v6e:2x2x1
jax: 0.10.0
libtpu: 0.0.40
codegen_flags: <defaults>
</compile_context>

<pallas_src>
import functools

import jax
import jax.numpy as jnp
from jax.experimental import pallas as pl
from jax.experimental.pallas import tpu as pltpu


# ----------------------------------------------------------------------------
# Fused per-layer encoder kernel (grid = (batch_blocks, layers))
# ----------------------------------------------------------------------------

def _encoder_layer_kernel(emb_ref, bias_ref, emb_ln_g_ref, emb_ln_b_ref,
                          wqkv_ref, bqkv_ref, wo_ref, bo_ref,
                          ln1_g_ref, ln1_b_ref, w1_ref, b1_ref,
                          w2_ref, b2_ref, ln2_g_ref, ln2_b_ref,
                          hid_ref,
                          x_ref, ctx_ref,
                          *, Bblk, S, H, nh, L, eps):
    f32, bf16 = jnp.float32, jnp.bfloat16
    dh = H // nh
    scale = 1.0 / (dh ** 0.5)

    def layernorm(x, g_ref, b_ref):
        # f32 VPU math; rsqrt on the EUP.
        mean = jnp.mean(x, axis=-1, keepdims=True)
        var = jnp.mean((x - mean) ** 2, axis=-1, keepdims=True)
        return (x - mean) * jax.lax.rsqrt(var + eps) * g_ref[...] + b_ref[...]

    def dense(x_bf16, w_ref, b_ref):
        # bf16 x bf16 -> f32 accumulate on the MXU, f32 bias epilogue.
        return jnp.dot(x_bf16, w_ref[...],
                       preferred_element_type=f32) + b_ref[...]

    l = pl.program_id(1)

    # ---- Layer 0: init the persistent residual scratch (embedding LN) ------
    @pl.when(l == 0)
    def _():
        x0 = layernorm(emb_ref[...].astype(f32), emb_ln_g_ref, emb_ln_b_ref)
        x_ref[...] = x0.astype(bf16)

    x_bf = x_ref[...]                                  # (rows, H) bf16 residual
    x_f32 = x_bf.astype(f32)

    # ---- Self-attention -----------------------------------------------------
    qkv = dense(x_bf, wqkv_ref, bqkv_ref)              # (rows, 3H) f32, fused QKV
    # Fold 1/sqrt(dh) into q once (cheaper than scaling every (S,S) score tile).
    q = qkv[:, 0:H] * scale
    k = qkv[:, H:2 * H]
    v = qkv[:, 2 * H:3 * H]

    mask_bias = bias_ref[...]                          # (Bblk, 1, S) f32, hoisted

    for hh in range(nh):                               # heads: short static loop
        c0, c1 = hh * dh, (hh + 1) * dh
        qh = q[:, c0:c1].reshape(Bblk, S, dh).astype(bf16)
        kh = k[:, c0:c1].reshape(Bblk, S, dh).astype(bf16)
        vh = v[:, c0:c1].reshape(Bblk, S, dh).astype(bf16)
        # Batched NT contraction over all Bblk sequences (no batch loop,
        # no explicit transpose).
        s = jnp.einsum('bqd,bkd->bqk', qh, kh,
                       preferred_element_type=f32)     # (Bblk, S, S)
        s = s + mask_bias
        s = s - jnp.max(s, axis=-1, keepdims=True)
        p = jnp.exp(s)
        p = p * pl.reciprocal(jnp.sum(p, axis=-1, keepdims=True), approx=True)
        ctxh = jnp.einsum('bqk,bkd->bqd', p.astype(bf16), vh,
                          preferred_element_type=f32)  # (Bblk, S, dh)
        # Slice-store into the VMEM ctx scratch (no jnp.concatenate).
        ctx_ref[:, c0:c1] = ctxh.reshape(Bblk * S, dh).astype(bf16)

    attn = dense(ctx_ref[...], wo_ref, bo_ref)         # (rows, H) f32
    h1 = layernorm(attn + x_f32, ln1_g_ref, ln1_b_ref)

    # ---- Feed-forward -------------------------------------------------------
    ff = dense(h1.astype(bf16), w1_ref, b1_ref)
    # TODO(synk): HF BERT/DPR uses exact erf GELU; tanh approximation used here
    # for robust Mosaic lowering (EUP tanh).
    ff = jax.nn.gelu(ff, approximate=True)
    ff = dense(ff.astype(bf16), w2_ref, b2_ref)
    x_new = layernorm(ff + h1, ln2_g_ref, ln2_b_ref)

    # Carry the residual to the next layer (bf16: half the VMEM / vreg traffic).
    x_ref[...] = x_new.astype(bf16)

    # ---- Last layer: emit final hidden states (lane-dense single HBM store) --
    @pl.when(l == L - 1)
    def _():
        hid_ref[...] = x_new.astype(hid_ref.dtype)


# ----------------------------------------------------------------------------
# Synthetic BERT/DPR encoder parameters (deterministic init, small config)
# ----------------------------------------------------------------------------

CFG = dict(vocab=128, hidden=32, heads=2, layers=2, inter=64,
           max_pos=16, type_vocab=2)


def init_params(key, cfg):
    H, I, L = cfg["hidden"], cfg["inter"], cfg["layers"]
    keys = iter(jax.random.split(key, 32))
    n = lambda shape, scale=0.02: (scale * jax.random.normal(next(keys), shape)
                                   ).astype(jnp.float32)
    ones = lambda shape: jnp.ones(shape, jnp.float32)
    zeros = lambda shape: jnp.zeros(shape, jnp.float32)

    return {
        "word_emb": n((cfg["vocab"], H)),
        "pos_emb": n((cfg["max_pos"], H)),
        "type_emb": n((cfg["type_vocab"], H)),
        "emb_ln_g": ones((1, H)),
        "emb_ln_b": zeros((1, H)),
        # Per-layer weights stacked along a leading L axis and streamed into
        # the kernel one layer at a time.  Matmul weights are stored bf16
        # (MXU-native, half the HBM->VMEM DMA); biases / LN params stay f32.
        "wqkv": n((L, H, 3 * H)).astype(jnp.bfloat16),   # fused Q|K|V
        "bqkv": zeros((L, 1, 3 * H)),
        "wo": n((L, H, H)).astype(jnp.bfloat16),
        "bo": zeros((L, 1, H)),
        "ln1_g": ones((L, 1, H)), "ln1_b": zeros((L, 1, H)),
        "w1": n((L, H, I)).astype(jnp.bfloat16),
        "b1": zeros((L, 1, I)),
        "w2": n((L, I, H)).astype(jnp.bfloat16),
        "b2": zeros((L, 1, H)),
        "ln2_g": ones((L, 1, H)), "ln2_b": zeros((L, 1, H)),
    }


def _vmem_budget_bytes():
    # ~75% of physical VMEM, capped at 100 MiB:
    #   v5e/v6e (128 MiB physical) -> ~96 MiB; v7x (64 MiB) -> 48 MiB.
    try:
        cap = pltpu.get_tpu_info().vmem_capacity_bytes
    except Exception:
        cap = 128 * 1024 * 1024
    return min(int(cap) * 3 // 4, 100 * 1024 * 1024)


# ----------------------------------------------------------------------------
# Forward pass (== CustomDPRQuestionEncoderWithDropout.forward)
# ----------------------------------------------------------------------------

def dpr_question_encoder_forward(params, input_ids, attention_mask, cfg=CFG):
    B, S = input_ids.shape
    H, nh, L, I = cfg["hidden"], cfg["heads"], cfg["layers"], cfg["inter"]

    # Sequences per grid block along the "parallel" batch axis.
    Bblk = 1
    assert B % Bblk == 0
    rows_blk = Bblk * S

    # Embedding gathers are glue in plain JAX (data-dependent table lookups).
    word = jnp.take(params["word_emb"], input_ids, axis=0)           # (B, S, H)
    pos = params["pos_emb"][:S][None, :, :]                          # (1, S, H)
    # token_type_ids assumed all-zero (HF default when omitted).
    tok = params["type_emb"][0][None, None, :]                       # (1, 1, H)
    emb = (word + pos + tok).reshape(B * S, H).astype(jnp.float32)

    # Compact additive key mask in broadcast-ready shape (B, 1, S):
    # 0 where attended, -1e9 on padding (scores are f32, so pads are killed).
    bias = ((1.0 - attention_mask.astype(jnp.float32)) * -1e9)[:, None, :]

    kernel = functools.partial(_encoder_layer_kernel,
                               Bblk=Bblk, S=S, H=H, nh=nh, L=L, eps=1e-12)

    resident2d = lambda shp: pl.BlockSpec(shp, lambda b, l: (0, 0))
    per_layer = lambda *dims: pl.BlockSpec((None, *dims), lambda b, l: (l, 0, 0))

    in_specs = [
        pl.BlockSpec((rows_blk, H), lambda b, l: (b, 0)),     # emb
        pl.BlockSpec((Bblk, 1, S), lambda b, l: (b, 0, 0)),   # key mask bias
        resident2d((1, H)),                                   # emb_ln_g
        resident2d((1, H)),                                   # emb_ln_b
        per_layer(H, 3 * H),                                  # wqkv (streamed)
        per_layer(1, 3 * H),                                  # bqkv
        per_layer(H, H),                                      # wo
        per_layer(1, H),                                      # bo
        per_layer(1, H),                                      # ln1_g
        per_layer(1, H),                                      # ln1_b
        per_layer(H, I),                                      # w1
        per_layer(1, I),                                      # b1
        per_layer(I, H),                                      # w2
        per_layer(1, H),                                      # b2
        per_layer(1, H),                                      # ln2_g
        per_layer(1, H),                                      # ln2_b
    ]

    hidden = pl.pallas_call(
        kernel,
        out_shape=jax.ShapeDtypeStruct((B * S, H), jnp.float32),
        grid=(B // Bblk, L),
        in_specs=in_specs,
        out_specs=pl.BlockSpec((rows_blk, H), lambda b, l: (b, 0)),
        scratch_shapes=[
            pltpu.VMEM((rows_blk, H), jnp.bfloat16),   # residual stream x
            pltpu.VMEM((rows_blk, H), jnp.bfloat16),   # attention context
        ],
        compiler_params=pltpu.CompilerParams(
            dimension_semantics=("parallel", "arbitrary"),
            vmem_limit_bytes=_vmem_budget_bytes()),
    )(emb, bias,
      params["emb_ln_g"], params["emb_ln_b"],
      params["wqkv"], params["bqkv"], params["wo"], params["bo"],
      params["ln1_g"], params["ln1_b"],
      params["w1"], params["b1"], params["w2"], params["b2"],
      params["ln2_g"], params["ln2_b"])

    # DPR pooler_output = [CLS] (row 0) hidden state of each sequence.
    pooled = hidden.reshape(B, S, H)[:, 0, :]

    # Note: self.dropout / self.layer_norm / self.linear are unused in the
    # module's forward(), so they are intentionally not applied.
    return pooled


# ----------------------------------------------------------------------------
# Main
# ----------------------------------------------------------------------------

if __name__ == "__main__":
    key = jax.random.PRNGKey(0)
    pkey, ikey = jax.random.split(key)

    params = init_params(pkey, CFG)

    B, S = 2, 8
    input_ids = jax.random.randint(ikey, (B, S), 0, CFG["vocab"], dtype=jnp.int32)
    attention_mask = jnp.array(
        [[1, 1, 1, 1, 1, 1, 1, 1],
         [1, 1, 1, 1, 1, 0, 0, 0]], dtype=jnp.int32)

    fwd = jax.jit(functools.partial(dpr_question_encoder_forward, cfg=CFG))
    pooled = fwd(params, input_ids, attention_mask)
    pooled = jax.block_until_ready(pooled)

    assert pooled.shape == (B, CFG["hidden"])
    assert bool(jnp.all(jnp.isfinite(pooled)))
    print("KERNEL_OK")
</pallas_src>

<mosaic_0001>
module attributes {stable_mosaic.version = 11 : i64} {
  func.func @_encoder_layer_kernel(%arg0: i32, %arg1: i32, %arg2: memref<8x32xf32, #tpu.memory_space<vmem>>, %arg3: memref<1x1x8xf32, #tpu.memory_space<vmem>>, %arg4: memref<1x32xf32, #tpu.memory_space<vmem>>, %arg5: memref<1x32xf32, #tpu.memory_space<vmem>>, %arg6: memref<1x32x96xbf16, #tpu.memory_space<vmem>>, %arg7: memref<1x1x96xf32, #tpu.memory_space<vmem>>, %arg8: memref<1x32x32xbf16, #tpu.memory_space<vmem>>, %arg9: memref<1x1x32xf32, #tpu.memory_space<vmem>>, %arg10: memref<1x1x32xf32, #tpu.memory_space<vmem>>, %arg11: memref<1x1x32xf32, #tpu.memory_space<vmem>>, %arg12: memref<1x32x64xbf16, #tpu.memory_space<vmem>>, %arg13: memref<1x1x64xf32, #tpu.memory_space<vmem>>, %arg14: memref<1x64x32xbf16, #tpu.memory_space<vmem>>, %arg15: memref<1x1x32xf32, #tpu.memory_space<vmem>>, %arg16: memref<1x1x32xf32, #tpu.memory_space<vmem>>, %arg17: memref<1x1x32xf32, #tpu.memory_space<vmem>>, %arg18: memref<8x32xf32, #tpu.memory_space<vmem>>, %arg19: memref<8x32xbf16, #tpu.memory_space<vmem>>, %arg20: memref<8x32xbf16, #tpu.memory_space<vmem>>) attributes {dimension_semantics = [#tpu.dimension_semantics<parallel>, #tpu.dimension_semantics<arbitrary>], iteration_bounds = array<i64: 2, 2>, scalar_prefetch = 0 : i64, scratch_operands = 2 : i64, tpu.core_type = #tpu.core_type<tc>, window_params = [{transform_indices = @transform_0, window_bounds = array<i64: 8, 32>}, {transform_indices = @transform_1, window_bounds = array<i64: 1, 1, 8>}, {pipeline_mode = #tpu.pipeline_mode<synchronous>, transform_indices = @transform_2, window_bounds = array<i64: 1, 32>}, {pipeline_mode = #tpu.pipeline_mode<synchronous>, transform_indices = @transform_3, window_bounds = array<i64: 1, 32>}, {transform_indices = @transform_4, window_bounds = array<i64: 1, 32, 96>}, {transform_indices = @transform_5, window_bounds = array<i64: 1, 1, 96>}, {transform_indices = @transform_6, window_bounds = array<i64: 1, 32, 32>}, {transform_indices = @transform_7, window_bounds = array<i64: 1, 1, 32>}, {transform_indices = @transform_8, window_bounds = array<i64: 1, 1, 32>}, {transform_indices = @transform_9, window_bounds = array<i64: 1, 1, 32>}, {transform_indices = @transform_10, window_bounds = array<i64: 1, 32, 64>}, {transform_indices = @transform_11, window_bounds = array<i64: 1, 1, 64>}, {transform_indices = @transform_12, window_bounds = array<i64: 1, 64, 32>}, {transform_indices = @transform_13, window_bounds = array<i64: 1, 1, 32>}, {transform_indices = @transform_14, window_bounds = array<i64: 1, 1, 32>}, {transform_indices = @transform_15, window_bounds = array<i64: 1, 1, 32>}, {transform_indices = @transform_16, window_bounds = array<i64: 8, 32>}]} {
    %c0_i32 = arith.constant 0 : i32
    %0 = arith.cmpi eq, %arg1, %c0_i32 : i32
    %1 = arith.extui %0 : i1 to i32
    %c0_i32_0 = arith.constant 0 : i32
    %2 = arith.cmpi ne, %1, %c0_i32_0 : i32
    scf.if %2 {
      %c0_75 = arith.constant 0 : index
      %c0_76 = arith.constant 0 : index
      %168 = vector.load %arg2[%c0_75, %c0_76] : memref<8x32xf32, #tpu.memory_space<vmem>>, vector<8x32xf32>
      %cst_77 = arith.constant dense<0.000000e+00> : vector<8xf32>
      %169 = vector.multi_reduction <add>, %168, %cst_77 [1] : vector<8x32xf32> to vector<8xf32>
      %170 = vector.shape_cast %169 : vector<8xf32> to vector<8x1xf32>
      %cst_78 = arith.constant 3.200000e+01 : f32
      %171 = vector.broadcast %cst_78 : f32 to vector<8x1xf32>
      %172 = arith.divf %170, %171 : vector<8x1xf32>
      %173 = vector.broadcast %172 : vector<8x1xf32> to vector<8x32xf32>
      %174 = arith.subf %168, %173 : vector<8x32xf32>
      %175 = arith.mulf %174, %174 : vector<8x32xf32>
      %cst_79 = arith.constant dense<0.000000e+00> : vector<8xf32>
      %176 = vector.multi_reduction <add>, %175, %cst_79 [1] : vector<8x32xf32> to vector<8xf32>
      %177 = vector.shape_cast %176 : vector<8xf32> to vector<8x1xf32>
      %cst_80 = arith.constant 3.200000e+01 : f32
      %178 = vector.broadcast %cst_80 : f32 to vector<8x1xf32>
      %179 = arith.divf %177, %178 : vector<8x1xf32>
      %180 = vector.broadcast %172 : vector<8x1xf32> to vector<8x32xf32>
      %181 = arith.subf %168, %180 : vector<8x32xf32>
      %cst_81 = arith.constant 9.99999996E-13 : f32
      %182 = vector.broadcast %cst_81 : f32 to vector<8x1xf32>
      %183 = arith.addf %179, %182 : vector<8x1xf32>
      %184 = math.rsqrt %183 : vector<8x1xf32>
      %185 = vector.broadcast %184 : vector<8x1xf32> to vector<8x32xf32>
      %186 = arith.mulf %181, %185 : vector<8x32xf32>
      %c0_82 = arith.constant 0 : index
      %c0_83 = arith.constant 0 : index
      %187 = vector.load %arg4[%c0_82, %c0_83] : memref<1x32xf32, #tpu.memory_space<vmem>>, vector<1x32xf32>
      %188 = vector.broadcast %187 : vector<1x32xf32> to vector<8x32xf32>
      %189 = arith.mulf %186, %188 : vector<8x32xf32>
      %c0_84 = arith.constant 0 : index
      %c0_85 = arith.constant 0 : index
      %190 = vector.load %arg5[%c0_84, %c0_85] : memref<1x32xf32, #tpu.memory_space<vmem>>, vector<1x32xf32>
      %191 = vector.broadcast %190 : vector<1x32xf32> to vector<8x32xf32>
      %192 = arith.addf %189, %191 : vector<8x32xf32>
      %193 = arith.truncf %192 : vector<8x32xf32> to vector<8x32xbf16>
      %c0_86 = arith.constant 0 : index
      %c0_87 = arith.constant 0 : index
      %194 = vector.load %arg19[%c0_86, %c0_87] : memref<8x32xbf16, #tpu.memory_space<vmem>>, vector<8x32xbf16>
      tpu.vector_store %arg19[%c0_86, %c0_87], %193 {strides = array<i32>} : memref<8x32xbf16, #tpu.memory_space<vmem>>, vector<8x32xbf16>,
    } else {
    }
    %c0 = arith.constant 0 : index
    %c0_1 = arith.constant 0 : index
    %3 = vector.load %arg19[%c0, %c0_1] : memref<8x32xbf16, #tpu.memory_space<vmem>>, vector<8x32xbf16>
    %4 = arith.extf %3 : vector<8x32xbf16> to vector<8x32xf32>
    %c0_2 = arith.constant 0 : index
    %c0_3 = arith.constant 0 : index
    %c0_4 = arith.constant 0 : index
    %5 = vector.load %arg6[%c0_2, %c0_3, %c0_4] : memref<1x32x96xbf16, #tpu.memory_space<vmem>>, vector<1x32x96xbf16>
    %6 = vector.shape_cast %5 : vector<1x32x96xbf16> to vector<32x96xbf16>
    %cst = arith.constant dense<0.000000e+00> : vector<8x96xf32>
    %7 = tpu.matmul %3, %6, %cst {dimension_numbers = #tpu.dot_dimension_numbers<[1], [0], [0], [1], [0, 0, 1, 1], [], []>} : vector<8x32xbf16>, vector<32x96xbf16>, vector<8x96xf32> -> vector<8x96xf32>
    %c0_5 = arith.constant 0 : index
    %c0_6 = arith.constant 0 : index
    %c0_7 = arith.constant 0 : index
    %8 = vector.load %arg7[%c0_5, %c0_6, %c0_7] : memref<1x1x96xf32, #tpu.memory_space<vmem>>, vector<1x1x96xf32>
    %9 = vector.shape_cast %8 : vector<1x1x96xf32> to vector<1x96xf32>
    %10 = vector.broadcast %9 : vector<1x96xf32> to vector<8x96xf32>
    %11 = arith.addf %7, %10 : vector<8x96xf32>
    %12 = vector.extract_strided_slice %11 {offsets = [0, 0], sizes = [8, 32], strides = [1, 1]} : vector<8x96xf32> to vector<8x32xf32>
    %cst_8 = arith.constant 2.500000e-01 : f32
    %13 = vector.broadcast %cst_8 : f32 to vector<8x32xf32>
    %14 = arith.mulf %12, %13 : vector<8x32xf32>
    %15 = vector.extract_strided_slice %11 {offsets = [0, 32], sizes = [8, 32], strides = [1, 1]} : vector<8x96xf32> to vector<8x32xf32>
    %16 = vector.extract_strided_slice %11 {offsets = [0, 64], sizes = [8, 32], strides = [1, 1]} : vector<8x96xf32> to vector<8x32xf32>
    %c0_9 = arith.constant 0 : index
    %c0_10 = arith.constant 0 : index
    %c0_11 = arith.constant 0 : index
    %17 = vector.load %arg3[%c0_9, %c0_10, %c0_11] : memref<1x1x8xf32, #tpu.memory_space<vmem>>, vector<1x1x8xf32>
    %18 = vector.extract_strided_slice %14 {offsets = [0, 0], sizes = [8, 16], strides = [1, 1]} : vector<8x32xf32> to vector<8x16xf32>
    %19 = vector.shape_cast %18 : vector<8x16xf32> to vector<1x8x16xf32>
    %20 = arith.truncf %19 : vector<1x8x16xf32> to vector<1x8x16xbf16>
    %21 = vector.extract_strided_slice %15 {offsets = [0, 0], sizes = [8, 16], strides = [1, 1]} : vector<8x32xf32> to vector<8x16xf32>
    %22 = vector.shape_cast %21 : vector<8x16xf32> to vector<1x8x16xf32>
    %23 = arith.truncf %22 : vector<1x8x16xf32> to vector<1x8x16xbf16>
    %24 = vector.extract_strided_slice %16 {offsets = [0, 0], sizes = [8, 16], strides = [1, 1]} : vector<8x32xf32> to vector<8x16xf32>
    %25 = vector.shape_cast %24 : vector<8x16xf32> to vector<1x8x16xf32>
    %26 = arith.truncf %25 : vector<1x8x16xf32> to vector<1x8x16xbf16>
    "tpu.trace_start"() <{level = 10 : i32, message = "bqd,bkd->bqk"}> : () -> ()
    %cst_12 = arith.constant dense<0.000000e+00> : vector<1x8x8xf32>
    %27 = tpu.matmul %20, %23, %cst_12 {dimension_numbers = #tpu.dot_dimension_numbers<[2], [2], [1], [1], [0, 0, 0, 1, 1, 1], [0], [0]>} : vector<1x8x16xbf16>, vector<1x8x16xbf16>, vector<1x8x8xf32> -> vector<1x8x8xf32>
    "tpu.trace_stop"() : () -> ()
    %28 = vector.broadcast %17 : vector<1x1x8xf32> to vector<1x8x8xf32>
    %29 = arith.addf %27, %28 : vector<1x8x8xf32>
    %cst_13 = arith.constant dense<0xFF800000> : vector<1x8xf32>
    %30 = vector.multi_reduction <maximumf>, %29, %cst_13 [2] : vector<1x8x8xf32> to vector<1x8xf32>
    %31 = vector.shape_cast %30 : vector<1x8xf32> to vector<1x8x1xf32>
    %32 = vector.broadcast %31 : vector<1x8x1xf32> to vector<1x8x8xf32>
    %33 = arith.subf %29, %32 : vector<1x8x8xf32>
    %34 = math.exp %33 : vector<1x8x8xf32>
    %cst_14 = arith.constant dense<0.000000e+00> : vector<1x8xf32>
    %35 = vector.multi_reduction <add>, %34, %cst_14 [2] : vector<1x8x8xf32> to vector<1x8xf32>
    %36 = vector.shape_cast %35 : vector<1x8xf32> to vector<1x8x1xf32>
    %37 = tpu.reciprocal %36 {approx = true} : vector<1x8x1xf32> -> vector<1x8x1xf32>
    %38 = vector.broadcast %37 : vector<1x8x1xf32> to vector<1x8x8xf32>
    %39 = arith.mulf %34, %38 : vector<1x8x8xf32>
    %40 = arith.truncf %39 : vector<1x8x8xf32> to vector<1x8x8xbf16>
    "tpu.trace_start"() <{level = 10 : i32, message = "bqk,bkd->bqd"}> : () -> ()
    %cst_15 = arith.constant dense<0.000000e+00> : vector<1x8x16xf32>
    %41 = tpu.matmul %40, %26, %cst_15 {dimension_numbers = #tpu.dot_dimension_numbers<[2], [1], [1], [2], [0, 0, 0, 1, 1, 2], [0], [0]>} : vector<1x8x8xbf16>, vector<1x8x16xbf16>, vector<1x8x16xf32> -> vector<1x8x16xf32>
    "tpu.trace_stop"() : () -> ()
    %42 = vector.shape_cast %41 : vector<1x8x16xf32> to vector<8x16xf32>
    %43 = arith.truncf %42 : vector<8x16xf32> to vector<8x16xbf16>
    %c0_16 = arith.constant 0 : index
    %c0_17 = arith.constant 0 : index
    %44 = vector.load %arg20[%c0_16, %c0_17] : memref<8x32xbf16, #tpu.memory_space<vmem>>, vector<8x16xbf16>
    tpu.vector_store %arg20[%c0_16, %c0_17], %43 {strides = array<i32>} : memref<8x32xbf16, #tpu.memory_space<vmem>>, vector<8x16xbf16>,
    %45 = vector.extract_strided_slice %14 {offsets = [0, 16], sizes = [8, 16], strides = [1, 1]} : vector<8x32xf32> to vector<8x16xf32>
    %46 = vector.shape_cast %45 : vector<8x16xf32> to vector<1x8x16xf32>
    %47 = arith.truncf %46 : vector<1x8x16xf32> to vector<1x8x16xbf16>
    %48 = vector.extract_strided_slice %15 {offsets = [0, 16], sizes = [8, 16], strides = [1, 1]} : vector<8x32xf32> to vector<8x16xf32>
    %49 = vector.shape_cast %48 : vector<8x16xf32> to vector<1x8x16xf32>
    %50 = arith.truncf %49 : vector<1x8x16xf32> to vector<1x8x16xbf16>
    %51 = vector.extract_strided_slice %16 {offsets = [0, 16], sizes = [8, 16], strides = [1, 1]} : vector<8x32xf32> to vector<8x16xf32>
    %52 = vector.shape_cast %51 : vector<8x16xf32> to vector<1x8x16xf32>
    %53 = arith.truncf %52 : vector<1x8x16xf32> to vector<1x8x16xbf16>
    "tpu.trace_start"() <{level = 10 : i32, message = "bqd,bkd->bqk"}> : () -> ()
    %cst_18 = arith.constant dense<0.000000e+00> : vector<1x8x8xf32>
    %54 = tpu.matmul %47, %50, %cst_18 {dimension_numbers = #tpu.dot_dimension_numbers<[2], [2], [1], [1], [0, 0, 0, 1, 1, 1], [0], [0]>} : vector<1x8x16xbf16>, vector<1x8x16xbf16>, vector<1x8x8xf32> -> vector<1x8x8xf32>
    "tpu.trace_stop"() : () -> ()
    %55 = vector.broadcast %17 : vector<1x1x8xf32> to vector<1x8x8xf32>
    %56 = arith.addf %54, %55 : vector<1x8x8xf32>
    %cst_19 = arith.constant dense<0xFF800000> : vector<1x8xf32>
    %57 = vector.multi_reduction <maximumf>, %56, %cst_19 [2] : vector<1x8x8xf32> to vector<1x8xf32>
    %58 = vector.shape_cast %57 : vector<1x8xf32> to vector<1x8x1xf32>
    %59 = vector.broadcast %58 : vector<1x8x1xf32> to vector<1x8x8xf32>
    %60 = arith.subf %56, %59 : vector<1x8x8xf32>
    %61 = math.exp %60 : vector<1x8x8xf32>
    %cst_20 = arith.constant dense<0.000000e+00> : vector<1x8xf32>
    %62 = vector.multi_reduction <add>, %61, %cst_20 [2] : vector<1x8x8xf32> to vector<1x8xf32>
    %63 = vector.shape_cast %62 : vector<1x8xf32> to vector<1x8x1xf32>
    %64 = tpu.reciprocal %63 {approx = true} : vector<1x8x1xf32> -> vector<1x8x1xf32>
    %65 = vector.broadcast %64 : vector<1x8x1xf32> to vector<1x8x8xf32>
    %66 = arith.mulf %61, %65 : vector<1x8x8xf32>
    %67 = arith.truncf %66 : vector<1x8x8xf32> to vector<1x8x8xbf16>
    "tpu.trace_start"() <{level = 10 : i32, message = "bqk,bkd->bqd"}> : () -> ()
    %cst_21 = arith.constant dense<0.000000e+00> : vector<1x8x16xf32>
    %68 = tpu.matmul %67, %53, %cst_21 {dimension_numbers = #tpu.dot_dimension_numbers<[2], [1], [1], [2], [0, 0, 0, 1, 1, 2], [0], [0]>} : vector<1x8x8xbf16>, vector<1x8x16xbf16>, vector<1x8x16xf32> -> vector<1x8x16xf32>
    "tpu.trace_stop"() : () -> ()
    %69 = vector.shape_cast %68 : vector<1x8x16xf32> to vector<8x16xf32>
    %70 = arith.truncf %69 : vector<8x16xf32> to vector<8x16xbf16>
    %c0_22 = arith.constant 0 : index
    %c16 = arith.constant 16 : index
    %71 = vector.load %arg20[%c0_22, %c16] : memref<8x32xbf16, #tpu.memory_space<vmem>>, vector<8x16xbf16>
    tpu.vector_store %arg20[%c0_22, %c16], %70 {strides = array<i32>} : memref<8x32xbf16, #tpu.memory_space<vmem>>, vector<8x16xbf16>,
    %c0_23 = arith.constant 0 : index
    %c0_24 = arith.constant 0 : index
    %72 = vector.load %arg20[%c0_23, %c0_24] : memref<8x32xbf16, #tpu.memory_space<vmem>>, vector<8x32xbf16>
    %c0_25 = arith.constant 0 : index
    %c0_26 = arith.constant 0 : index
    %c0_27 = arith.constant 0 : index
    %73 = vector.load %arg8[%c0_25, %c0_26, %c0_27] : memref<1x32x32xbf16, #tpu.memory_space<vmem>>, vector<1x32x32xbf16>
    %74 = vector.shape_cast %73 : vector<1x32x32xbf16> to vector<32x32xbf16>
    %cst_28 = arith.constant dense<0.000000e+00> : vector<8x32xf32>
    %75 = tpu.matmul %72, %74, %cst_28 {dimension_numbers = #tpu.dot_dimension_numbers<[1], [0], [0], [1], [0, 0, 1, 1], [], []>} : vector<8x32xbf16>, vector<32x32xbf16>, vector<8x32xf32> -> vector<8x32xf32>
    %c0_29 = arith.constant 0 : index
    %c0_30 = arith.constant 0 : index
    %c0_31 = arith.constant 0 : index
    %76 = vector.load %arg9[%c0_29, %c0_30, %c0_31] : memref<1x1x32xf32, #tpu.memory_space<vmem>>, vector<1x1x32xf32>
    %77 = vector.shape_cast %76 : vector<1x1x32xf32> to vector<1x32xf32>
    %78 = vector.broadcast %77 : vector<1x32xf32> to vector<8x32xf32>
    %79 = arith.addf %75, %78 : vector<8x32xf32>
    %80 = arith.addf %79, %4 : vector<8x32xf32>
    %cst_32 = arith.constant dense<0.000000e+00> : vector<8xf32>
    %81 = vector.multi_reduction <add>, %80, %cst_32 [1] : vector<8x32xf32> to vector<8xf32>
    %82 = vector.shape_cast %81 : vector<8xf32> to vector<8x1xf32>
    %cst_33 = arith.constant 3.200000e+01 : f32
    %83 = vector.broadcast %cst_33 : f32 to vector<8x1xf32>
    %84 = arith.divf %82, %83 : vector<8x1xf32>
    %85 = vector.broadcast %84 : vector<8x1xf32> to vector<8x32xf32>
    %86 = arith.subf %80, %85 : vector<8x32xf32>
    %87 = arith.mulf %86, %86 : vector<8x32xf32>
    %cst_34 = arith.constant dense<0.000000e+00> : vector<8xf32>
    %88 = vector.multi_reduction <add>, %87, %cst_34 [1] : vector<8x32xf32> to vector<8xf32>
    %89 = vector.shape_cast %88 : vector<8xf32> to vector<8x1xf32>
    %cst_35 = arith.constant 3.200000e+01 : f32
    %90 = vector.broadcast %cst_35 : f32 to vector<8x1xf32>
    %91 = arith.divf %89, %90 : vector<8x1xf32>
    %92 = vector.broadcast %84 : vector<8x1xf32> to vector<8x32xf32>
    %93 = arith.subf %80, %92 : vector<8x32xf32>
    %cst_36 = arith.constant 9.99999996E-13 : f32
    %94 = vector.broadcast %cst_36 : f32 to vector<8x1xf32>
    %95 = arith.addf %91, %94 : vector<8x1xf32>
    %96 = math.rsqrt %95 : vector<8x1xf32>
    %97 = vector.broadcast %96 : vector<8x1xf32> to vector<8x32xf32>
    %98 = arith.mulf %93, %97 : vector<8x32xf32>
    %c0_37 = arith.constant 0 : index
    %c0_38 = arith.constant 0 : index
    %c0_39 = arith.constant 0 : index
    %99 = vector.load %arg10[%c0_37, %c0_38, %c0_39] : memref<1x1x32xf32, #tpu.memory_space<vmem>>, vector<1x1x32xf32>
    %100 = vector.shape_cast %99 : vector<1x1x32xf32> to vector<1x32xf32>
    %101 = vector.broadcast %100 : vector<1x32xf32> to vector<8x32xf32>
    %102 = arith.mulf %98, %101 : vector<8x32xf32>
    %c0_40 = arith.constant 0 : index
    %c0_41 = arith.constant 0 : index
    %c0_42 = arith.constant 0 : index
    %103 = vector.load %arg11[%c0_40, %c0_41, %c0_42] : memref<1x1x32xf32, #tpu.memory_space<vmem>>, vector<1x1x32xf32>
    %104 = vector.shape_cast %103 : vector<1x1x32xf32> to vector<1x32xf32>
    %105 = vector.broadcast %104 : vector<1x32xf32> to vector<8x32xf32>
    %106 = arith.addf %102, %105 : vector<8x32xf32>
    %107 = arith.truncf %106 : vector<8x32xf32> to vector<8x32xbf16>
    %c0_43 = arith.constant 0 : index
    %c0_44 = arith.constant 0 : index
    %c0_45 = arith.constant 0 : index
    %108 = vector.load %arg12[%c0_43, %c0_44, %c0_45] : memref<1x32x64xbf16, #tpu.memory_space<vmem>>, vector<1x32x64xbf16>
    %109 = vector.shape_cast %108 : vector<1x32x64xbf16> to vector<32x64xbf16>
    %cst_46 = arith.constant dense<0.000000e+00> : vector<8x64xf32>
    %110 = tpu.matmul %107, %109, %cst_46 {dimension_numbers = #tpu.dot_dimension_numbers<[1], [0], [0], [1], [0, 0, 1, 1], [], []>} : vector<8x32xbf16>, vector<32x64xbf16>, vector<8x64xf32> -> vector<8x64xf32>
    %c0_47 = arith.constant 0 : index
    %c0_48 = arith.constant 0 : index
    %c0_49 = arith.constant 0 : index
    %111 = vector.load %arg13[%c0_47, %c0_48, %c0_49] : memref<1x1x64xf32, #tpu.memory_space<vmem>>, vector<1x1x64xf32>
    %112 = vector.shape_cast %111 : vector<1x1x64xf32> to vector<1x64xf32>
    %113 = vector.broadcast %112 : vector<1x64xf32> to vector<8x64xf32>
    %114 = arith.addf %110, %113 : vector<8x64xf32>
    %115 = arith.mulf %114, %114 : vector<8x64xf32>
    %116 = arith.mulf %114, %115 : vector<8x64xf32>
    %cst_50 = arith.constant 4.471500e-02 : f32
    %117 = vector.broadcast %cst_50 : f32 to vector<8x64xf32>
    %118 = arith.mulf %117, %116 : vector<8x64xf32>
    %119 = arith.addf %114, %118 : vector<8x64xf32>
    %cst_51 = arith.constant 0.797884583 : f32
    %120 = vector.broadcast %cst_51 : f32 to vector<8x64xf32>
    %121 = arith.mulf %120, %119 : vector<8x64xf32>
    %122 = math.tanh %121 : vector<8x64xf32>
    %cst_52 = arith.constant 1.000000e+00 : f32
    %123 = vector.broadcast %cst_52 : f32 to vector<8x64xf32>
    %124 = arith.addf %123, %122 : vector<8x64xf32>
    %cst_53 = arith.constant 5.000000e-01 : f32
    %125 = vector.broadcast %cst_53 : f32 to vector<8x64xf32>
    %126 = arith.mulf %125, %124 : vector<8x64xf32>
    %127 = arith.mulf %114, %126 : vector<8x64xf32>
    %128 = arith.truncf %127 : vector<8x64xf32> to vector<8x64xbf16>
    %c0_54 = arith.constant 0 : index
    %c0_55 = arith.constant 0 : index
    %c0_56 = arith.constant 0 : index
    %129 = vector.load %arg14[%c0_54, %c0_55, %c0_56] : memref<1x64x32xbf16, #tpu.memory_space<vmem>>, vector<1x64x32xbf16>
    %130 = vector.shape_cast %129 : vector<1x64x32xbf16> to vector<64x32xbf16>
    %cst_57 = arith.constant dense<0.000000e+00> : vector<8x32xf32>
    %131 = tpu.matmul %128, %130, %cst_57 {dimension_numbers = #tpu.dot_dimension_numbers<[1], [0], [0], [1], [0, 0, 1, 1], [], []>} : vector<8x64xbf16>, vector<64x32xbf16>, vector<8x32xf32> -> vector<8x32xf32>
    %c0_58 = arith.constant 0 : index
    %c0_59 = arith.constant 0 : index
    %c0_60 = arith.constant 0 : index
    %132 = vector.load %arg15[%c0_58, %c0_59, %c0_60] : memref<1x1x32xf32, #tpu.memory_space<vmem>>, vector<1x1x32xf32>
    %133 = vector.shape_cast %132 : vector<1x1x32xf32> to vector<1x32xf32>
    %134 = vector.broadcast %133 : vector<1x32xf32> to vector<8x32xf32>
    %135 = arith.addf %131, %134 : vector<8x32xf32>
    %136 = arith.addf %135, %106 : vector<8x32xf32>
    %cst_61 = arith.constant dense<0.000000e+00> : vector<8xf32>
    %137 = vector.multi_reduction <add>, %136, %cst_61 [1] : vector<8x32xf32> to vector<8xf32>
    %138 = vector.shape_cast %137 : vector<8xf32> to vector<8x1xf32>
    %cst_62 = arith.constant 3.200000e+01 : f32
    %139 = vector.broadcast %cst_62 : f32 to vector<8x1xf32>
    %140 = arith.divf %138, %139 : vector<8x1xf32>
    %141 = vector.broadcast %140 : vector<8x1xf32> to vector<8x32xf32>
    %142 = arith.subf %136, %141 : vector<8x32xf32>
    %143 = arith.mulf %142, %142 : vector<8x32xf32>
    %cst_63 = arith.constant dense<0.000000e+00> : vector<8xf32>
    %144 = vector.multi_reduction <add>, %143, %cst_63 [1] : vector<8x32xf32> to vector<8xf32>
    %145 = vector.shape_cast %144 : vector<8xf32> to vector<8x1xf32>
    %cst_64 = arith.constant 3.200000e+01 : f32
    %146 = vector.broadcast %cst_64 : f32 to vector<8x1xf32>
    %147 = arith.divf %145, %146 : vector<8x1xf32>
    %148 = vector.broadcast %140 : vector<8x1xf32> to vector<8x32xf32>
    %149 = arith.subf %136, %148 : vector<8x32xf32>
    %cst_65 = arith.constant 9.99999996E-13 : f32
    %150 = vector.broadcast %cst_65 : f32 to vector<8x1xf32>
    %151 = arith.addf %147, %150 : vector<8x1xf32>
    %152 = math.rsqrt %151 : vector<8x1xf32>
    %153 = vector.broadcast %152 : vector<8x1xf32> to vector<8x32xf32>
    %154 = arith.mulf %149, %153 : vector<8x32xf32>
    %c0_66 = arith.constant 0 : index
    %c0_67 = arith.constant 0 : index
    %c0_68 = arith.constant 0 : index
    %155 = vector.load %arg16[%c0_66, %c0_67, %c0_68] : memref<1x1x32xf32, #tpu.memory_space<vmem>>, vector<1x1x32xf32>
    %156 = vector.shape_cast %155 : vector<1x1x32xf32> to vector<1x32xf32>
    %157 = vector.broadcast %156 : vector<1x32xf32> to vector<8x32xf32>
    %158 = arith.mulf %154, %157 : vector<8x32xf32>
    %c0_69 = arith.constant 0 : index
    %c0_70 = arith.constant 0 : index
    %c0_71 = arith.constant 0 : index
    %159 = vector.load %arg17[%c0_69, %c0_70, %c0_71] : memref<1x1x32xf32, #tpu.memory_space<vmem>>, vector<1x1x32xf32>
    %160 = vector.shape_cast %159 : vector<1x1x32xf32> to vector<1x32xf32>
    %161 = vector.broadcast %160 : vector<1x32xf32> to vector<8x32xf32>
    %162 = arith.addf %158, %161 : vector<8x32xf32>
    %163 = arith.truncf %162 : vector<8x32xf32> to vector<8x32xbf16>
    %c0_72 = arith.constant 0 : index
    %c0_73 = arith.constant 0 : index
    %164 = vector.load %arg19[%c0_72, %c0_73] : memref<8x32xbf16, #tpu.memory_space<vmem>>, vector<8x32xbf16>
    tpu.vector_store %arg19[%c0_72, %c0_73], %163 {strides = array<i32>} : memref<8x32xbf16, #tpu.memory_space<vmem>>, vector<8x32xbf16>,
    %c1_i32 = arith.constant 1 : i32
    %165 = arith.cmpi eq, %arg1, %c1_i32 : i32
    %166 = arith.extui %165 : i1 to i32
    %c0_i32_74 = arith.constant 0 : i32
    %167 = arith.cmpi ne, %166, %c0_i32_74 : i32
    scf.if %167 {
      %c0_75 = arith.constant 0 : index
      %c0_76 = arith.constant 0 : index
      %168 = vector.load %arg18[%c0_75, %c0_76] : memref<8x32xf32, #tpu.memory_space<vmem>>, vector<8x32xf32>
      tpu.vector_store %arg18[%c0_75, %c0_76], %162 {strides = array<i32>} : memref<8x32xf32, #tpu.memory_space<vmem>>, vector<8x32xf32>,
    } else {
    }
    return
  }
  func.func @transform_0(%arg0: i32, %arg1: i32) -> (i32, i32) {
    %c0_i32 = arith.constant 0 : i32
    %c0_i32_0 = arith.constant 0 : i32
    return %arg0, %c0_i32 : i32, i32
  }
  func.func @transform_1(%arg0: i32, %arg1: i32) -> (i32, i32, i32) {
    %c0_i32 = arith.constant 0 : i32
    %c0_i32_0 = arith.constant 0 : i32
    %c0_i32_1 = arith.constant 0 : i32
    return %arg0, %c0_i32, %c0_i32_0 : i32, i32, i32
  }
  func.func @transform_2(%arg0: i32, %arg1: i32) -> (i32, i32) {
    %c0_i32 = arith.constant 0 : i32
    %c0_i32_0 = arith.constant 0 : i32
    %c0_i32_1 = arith.constant 0 : i32
    return %c0_i32, %c0_i32_0 : i32, i32
  }
  func.func @transform_3(%arg0: i32, %arg1: i32) -> (i32, i32) {
    %c0_i32 = arith.constant 0 : i32
    %c0_i32_0 = arith.constant 0 : i32
    %c0_i32_1 = arith.constant 0 : i32
    return %c0_i32, %c0_i32_0 : i32, i32
  }
  func.func @transform_4(%arg0: i32, %arg1: i32) -> (i32, i32, i32) {
    %c0_i32 = arith.constant 0 : i32
    %c0_i32_0 = arith.constant 0 : i32
    %c0_i32_1 = arith.constant 0 : i32
    return %arg1, %c0_i32, %c0_i32_0 : i32, i32, i32
  }
  func.func @transform_5(%arg0: i32, %arg1: i32) -> (i32, i32, i32) {
    %c0_i32 = arith.constant 0 : i32
    %c0_i32_0 = arith.constant 0 : i32
    %c0_i32_1 = arith.constant 0 : i32
    return %arg1, %c0_i32, %c0_i32_0 : i32, i32, i32
  }
  func.func @transform_6(%arg0: i32, %arg1: i32) -> (i32, i32, i32) {
    %c0_i32 = arith.constant 0 : i32
    %c0_i32_0 = arith.constant 0 : i32
    %c0_i32_1 = arith.constant 0 : i32
    return %arg1, %c0_i32, %c0_i32_0 : i32, i32, i32
  }
  func.func @transform_7(%arg0: i32, %arg1: i32) -> (i32, i32, i32) {
    %c0_i32 = arith.constant 0 : i32
    %c0_i32_0 = arith.constant 0 : i32
    %c0_i32_1 = arith.constant 0 : i32
    return %arg1, %c0_i32, %c0_i32_0 : i32, i32, i32
  }
  func.func @transform_8(%arg0: i32, %arg1: i32) -> (i32, i32, i32) {
    %c0_i32 = arith.constant 0 : i32
    %c0_i32_0 = arith.constant 0 : i32
    %c0_i32_1 = arith.constant 0 : i32
    return %arg1, %c0_i32, %c0_i32_0 : i32, i32, i32
  }
  func.func @transform_9(%arg0: i32, %arg1: i32) -> (i32, i32, i32) {
    %c0_i32 = arith.constant 0 : i32
    %c0_i32_0 = arith.constant 0 : i32
    %c0_i32_1 = arith.constant 0 : i32
    return %arg1, %c0_i32, %c0_i32_0 : i32, i32, i32
  }
  func.func @transform_10(%arg0: i32, %arg1: i32) -> (i32, i32, i32) {
    %c0_i32 = arith.constant 0 : i32
    %c0_i32_0 = arith.constant 0 : i32
    %c0_i32_1 = arith.constant 0 : i32
    return %arg1, %c0_i32, %c0_i32_0 : i32, i32, i32
  }
  func.func @transform_11(%arg0: i32, %arg1: i32) -> (i32, i32, i32) {
    %c0_i32 = arith.constant 0 : i32
    %c0_i32_0 = arith.constant 0 : i32
    %c0_i32_1 = arith.constant 0 : i32
    return %arg1, %c0_i32, %c0_i32_0 : i32, i32, i32
  }
  func.func @transform_12(%arg0: i32, %arg1: i32) -> (i32, i32, i32) {
    %c0_i32 = arith.constant 0 : i32
    %c0_i32_0 = arith.constant 0 : i32
    %c0_i32_1 = arith.constant 0 : i32
    return %arg1, %c0_i32, %c0_i32_0 : i32, i32, i32
  }
  func.func @transform_13(%arg0: i32, %arg1: i32) -> (i32, i32, i32) {
    %c0_i32 = arith.constant 0 : i32
    %c0_i32_0 = arith.constant 0 : i32
    %c0_i32_1 = arith.constant 0 : i32
    return %arg1, %c0_i32, %c0_i32_0 : i32, i32, i32
  }
  func.func @transform_14(%arg0: i32, %arg1: i32) -> (i32, i32, i32) {
    %c0_i32 = arith.constant 0 : i32
    %c0_i32_0 = arith.constant 0 : i32
    %c0_i32_1 = arith.constant 0 : i32
    return %arg1, %c0_i32, %c0_i32_0 : i32, i32, i32
  }
  func.func @transform_15(%arg0: i32, %arg1: i32) -> (i32, i32, i32) {
    %c0_i32 = arith.constant 0 : i32
    %c0_i32_0 = arith.constant 0 : i32
    %c0_i32_1 = arith.constant 0 : i32
    return %arg1, %c0_i32, %c0_i32_0 : i32, i32, i32
  }
  func.func @transform_16(%arg0: i32, %arg1: i32) -> (i32, i32) {
    %c0_i32 = arith.constant 0 : i32
    %c0_i32_0 = arith.constant 0 : i32
    return %arg0, %c0_i32 : i32, i32
  }
}

</mosaic_0001>

<llo_original>
// kernel: dpr_question_encoder_forward.1
$region0: #{dpr_question_encoder_forward.1}
  #allocation0 [shape = 'u32[]', space=smem, size = 0x4, offset = 0x4, fixed_abs, tag = 'smem constant byte address 0x4 - core index']
  #allocation1 [shape = 'u32[144,128]{1,0:T(1,128)}', space=vmem, size = 0x12000, scoped, tag = 'internal scratch']
  #allocation2 [shape = 'bf16[8,32]{1,0:T(8,128)(2,1)}', space=vmem, size = 0x800, scoped, tag = 'scratch operand']
  #allocation3 [shape = 'bf16[8,32]{1,0:T(8,128)(2,1)}', space=vmem, size = 0x800, scoped, tag = 'scratch operand']
  %s0 = inlined_call_operand.vmem [shape: f32[16,32], index: 0, kind: input, shape index: {}]
  %s1 = inlined_call_operand.vmem [shape: f32[2,1,8], index: 1, kind: input, shape index: {}]
  %s2 = inlined_call_operand.vmem [shape: f32[1,32], index: 2, kind: input, shape index: {}]
  %s3 = inlined_call_operand.vmem [shape: f32[1,32], index: 3, kind: input, shape index: {}]
  %s4 = inlined_call_operand.vmem [shape: bf16[2,32,96], index: 4, kind: input, shape index: {}]
  %s5 = inlined_call_operand.vmem [shape: f32[2,1,96], index: 5, kind: input, shape index: {}]
  %s6 = inlined_call_operand.vmem [shape: bf16[2,32,32], index: 6, kind: input, shape index: {}]
  %s7 = inlined_call_operand.vmem [shape: f32[2,1,32], index: 7, kind: input, shape index: {}]
  %s8 = inlined_call_operand.vmem [shape: f32[2,1,32], index: 8, kind: input, shape index: {}]
  %s9 = inlined_call_operand.vmem [shape: f32[2,1,32], index: 9, kind: input, shape index: {}]
  %s10 = inlined_call_operand.vmem [shape: bf16[2,32,64], index: 10, kind: input, shape index: {}]
  %s11 = inlined_call_operand.vmem [shape: f32[2,1,64], index: 11, kind: input, shape index: {}]
  %s12 = inlined_call_operand.vmem [shape: bf16[2,64,32], index: 12, kind: input, shape index: {}]
  %s13 = inlined_call_operand.vmem [shape: f32[2,1,32], index: 13, kind: input, shape index: {}]
  %s14 = inlined_call_operand.vmem [shape: f32[2,1,32], index: 14, kind: input, shape index: {}]
  %s15 = inlined_call_operand.vmem [shape: f32[2,1,32], index: 15, kind: input, shape index: {}]
  %s16 = inlined_call_operand.vmem [shape: f32[16,32], index: 16, kind: output, shape index: {}]
  %s17 = sld [smem:[#allocation0]]
  $region105: #{dpr_question_encoder_forward.1} parent=0
    _
  %s19 = ssub.s32 1, %s17
  %s20 = scalar_select 0, %s19, %s17
  loop: start=0, step=1, limit=6
  $region2: #{dpr_question_encoder_forward.1} parent=0 // loop_pre_header
    _
  $region3: #{dpr_question_encoder_forward.1} parent=0 // loop_header
    %s22 = sphi 0, %s26
    %p23 = scmp.ge.s32.totalorder %s22, 6
    %s29 = sphi 0, %s41
    %s30 = sphi 0, %s37
    %s31 = sphi 0, %s29
    %s32 = sphi 0, %s30
    %s33 = sphi 0, %s31
    %s34 = sphi 0, %s32
    %s44 = sphi 0, %s46
    %s47 = sphi 0, %s44
    %s48 = sphi 0, %s47
    %s64 = sphi 0, %s48
    %s70 = sphi 0, %s72
    %s73 = sphi 0, %s70
    %s74 = sphi 0, %s73
    %s90 = sphi 0, %s74
    %s94 = sphi 0, %s94
    %s96 = sphi 0, %s94
    %s97 = sphi 0, %s96
    %s111 = sphi 0, %s97
    %s115 = sphi 0, %s115
    %s117 = sphi 0, %s115
    %s118 = sphi 0, %s117
    %s132 = sphi 0, %s118
    %s138 = sphi 0, %s140
    %s141 = sphi 0, %s138
    %s142 = sphi 0, %s141
    %s158 = sphi 0, %s142
    %s164 = sphi 0, %s166
    %s167 = sphi 0, %s164
    %s168 = sphi 0, %s167
    %s184 = sphi 0, %s168
    %s190 = sphi 0, %s192
    %s193 = sphi 0, %s190
    %s194 = sphi 0, %s193
    %s210 = sphi 0, %s194
    %s216 = sphi 0, %s218
    %s219 = sphi 0, %s216
    %s220 = sphi 0, %s219
    %s236 = sphi 0, %s220
    %s242 = sphi 0, %s244
    %s245 = sphi 0, %s242
    %s246 = sphi 0, %s245
    %s262 = sphi 0, %s246
    %s268 = sphi 0, %s270
    %s271 = sphi 0, %s268
    %s272 = sphi 0, %s271
    %s288 = sphi 0, %s272
    %s294 = sphi 0, %s296
    %s297 = sphi 0, %s294
    %s298 = sphi 0, %s297
    %s314 = sphi 0, %s298
    %s320 = sphi 0, %s322
    %s323 = sphi 0, %s320
    %s324 = sphi 0, %s323
    %s340 = sphi 0, %s324
    %s346 = sphi 0, %s348
    %s349 = sphi 0, %s346
    %s350 = sphi 0, %s349
    %s366 = sphi 0, %s350
    %s372 = sphi 0, %s374
    %s375 = sphi 0, %s372
    %s376 = sphi 0, %s375
    %s392 = sphi 0, %s376
    %s398 = sphi 0, %s400
    %s401 = sphi 0, %s398
    %s402 = sphi 0, %s401
    %s418 = sphi 0, %s402
    %s424 = sphi 0, %s426
    %s427 = sphi 0, %s424
    %s428 = sphi 0, %s427
    %s444 = sphi 0, %s428
    %s450 = sphi 0, %s452
    %s453 = sphi 0, %s450
    %s454 = sphi 0, %s453
    %s470 = sphi 0, %s454
  $region4: #{dpr_question_encoder_forward.1} parent=0 // loop_header_branch
    %25 = sbr.rel (%p23) target = $region8
  $region5: #{dpr_question_encoder_forward.1} parent=0 // loop_body
    %s27 = ssub.s32 %s22, 1
    %s28 = ssub.s32 %s22, 2
    %s35 = sadd.s32 1, %s30
    %p36 = scmp.ge.s32.totalorder %s35, 2
    %s37 = scalar_select %p36, 0, %s35
    %s38 = sadd.s32 1, %s29
    %s39 = scalar_select %p36, %s38, %s29
    %p40 = scmp.ge.s32.totalorder %s39, 2
    %s41 = scalar_select %p40, 0, %s39
    %s42 = ssub.s32 %s29, %s41
    %p43 = scmp.eq.s32.totalorder %s42, 0
    %s45 = sadd.s32 %s44, 1
    %s46 = scalar_select %p43, %s44, %s45
    %p49 = pneg %p43
    %p50 = scmp.eq.s32.totalorder %s22, 3
    %p51 = por %p49, %p50
    %p52 = scmp.ne.s32.totalorder %s44, %s47
    %p53 = scmp.eq.s32.totalorder %s22, 0
    %p54 = por %p52, %p53
    %p55 = scmp.ne.s32.totalorder %s44, %s47
    %p56 = scmp.eq.s32.totalorder %s27, 3
    %p57 = por %p55, %p56
    %p58 = scmp.ne.s32.totalorder %s47, %s48
    %p59 = scmp.eq.s32.totalorder %s27, 0
    %p60 = por %p58, %p59
    %p61 = scmp.ne.s32.totalorder %s47, %s48
    %p62 = scmp.eq.s32.totalorder %s28, 3
    %p63 = por %p61, %p62
    %p65 = scmp.ne.s32.totalorder %s48, %s64
    %p66 = scmp.eq.s32.totalorder %s28, 0
    %p67 = por %p65, %p66
    %s68 = ssub.s32 %s29, %s41
    %p69 = scmp.eq.s32.totalorder %s68, 0
    %s71 = sadd.s32 %s70, 1
    %s72 = scalar_select %p69, %s70, %s71
    %p75 = pneg %p69
    %p76 = scmp.eq.s32.totalorder %s22, 3
    %p77 = por %p75, %p76
    %p78 = scmp.ne.s32.totalorder %s70, %s73
    %p79 = scmp.eq.s32.totalorder %s22, 0
    %p80 = por %p78, %p79
    %p81 = scmp.ne.s32.totalorder %s70, %s73
    %p82 = scmp.eq.s32.totalorder %s27, 3
    %p83 = por %p81, %p82
    %p84 = scmp.ne.s32.totalorder %s73, %s74
    %p85 = scmp.eq.s32.totalorder %s27, 0
    %p86 = por %p84, %p85
    %p87 = scmp.ne.s32.totalorder %s73, %s74
    %p88 = scmp.eq.s32.totalorder %s28, 3
    %p89 = por %p87, %p88
    %p91 = scmp.ne.s32.totalorder %s74, %s90
    %p92 = scmp.eq.s32.totalorder %s28, 0
    %p93 = por %p91, %p92
    %s95 = sadd.s32 %s94, 1
    %p98 = scmp.eq.s32.totalorder %s22, 3
    %p99 = scmp.ne.s32.totalorder %s94, %s96
    %p100 = scmp.eq.s32.totalorder %s22, 0
    %p101 = por %p99, %p100
    %p102 = scmp.ne.s32.totalorder %s94, %s96
    %p103 = scmp.eq.s32.totalorder %s27, 3
    %p104 = por %p102, %p103
    %p105 = scmp.ne.s32.totalorder %s96, %s97
    %p106 = scmp.eq.s32.totalorder %s27, 0
    %p107 = por %p105, %p106
    %p108 = scmp.ne.s32.totalorder %s96, %s97
    %p109 = scmp.eq.s32.totalorder %s28, 3
    %p110 = por %p108, %p109
    %p112 = scmp.ne.s32.totalorder %s97, %s111
    %p113 = scmp.eq.s32.totalorder %s28, 0
    %p114 = por %p112, %p113
    %s116 = sadd.s32 %s115, 1
    %p119 = scmp.eq.s32.totalorder %s22, 3
    %p120 = scmp.ne.s32.totalorder %s115, %s117
    %p121 = scmp.eq.s32.totalorder %s22, 0
    %p122 = por %p120, %p121
    %p123 = scmp.ne.s32.totalorder %s115, %s117
    %p124 = scmp.eq.s32.totalorder %s27, 3
    %p125 = por %p123, %p124
    %p126 = scmp.ne.s32.totalorder %s117, %s118
    %p127 = scmp.eq.s32.totalorder %s27, 0
    %p128 = por %p126, %p127
    %p129 = scmp.ne.s32.totalorder %s117, %s118
    %p130 = scmp.eq.s32.totalorder %s28, 3
    %p131 = por %p129, %p130
    %p133 = scmp.ne.s32.totalorder %s118, %s132
    %p134 = scmp.eq.s32.totalorder %s28, 0
    %p135 = por %p133, %p134
    %s136 = ssub.s32 %s30, %s37
    %p137 = scmp.eq.s32.totalorder %s136, 0
    %s139 = sadd.s32 %s138, 1
    %s140 = scalar_select %p137, %s138, %s139
    %p143 = pneg %p137
    %p144 = scmp.eq.s32.totalorder %s22, 3
    %p145 = por %p143, %p144
    %p146 = scmp.ne.s32.totalorder %s138, %s141
    %p147 = scmp.eq.s32.totalorder %s22, 0
    %p148 = por %p146, %p147
    %p149 = scmp.ne.s32.totalorder %s138, %s141
    %p150 = scmp.eq.s32.totalorder %s27, 3
    %p151 = por %p149, %p150
    %p152 = scmp.ne.s32.totalorder %s141, %s142
    %p153 = scmp.eq.s32.totalorder %s27, 0
    %p154 = por %p152, %p153
    %p155 = scmp.ne.s32.totalorder %s141, %s142
    %p156 = scmp.eq.s32.totalorder %s28, 3
    %p157 = por %p155, %p156
    %p159 = scmp.ne.s32.totalorder %s142, %s158
    %p160 = scmp.eq.s32.totalorder %s28, 0
    %p161 = por %p159, %p160
    %s162 = ssub.s32 %s30, %s37
    %p163 = scmp.eq.s32.totalorder %s162, 0
    %s165 = sadd.s32 %s164, 1
    %s166 = scalar_select %p163, %s164, %s165
    %p169 = pneg %p163
    %p170 = scmp.eq.s32.totalorder %s22, 3
    %p171 = por %p169, %p170
    %p172 = scmp.ne.s32.totalorder %s164, %s167
    %p173 = scmp.eq.s32.totalorder %s22, 0
    %p174 = por %p172, %p173
    %p175 = scmp.ne.s32.totalorder %s164, %s167
    %p176 = scmp.eq.s32.totalorder %s27, 3
    %p177 = por %p175, %p176
    %p178 = scmp.ne.s32.totalorder %s167, %s168
    %p179 = scmp.eq.s32.totalorder %s27, 0
    %p180 = por %p178, %p179
    %p181 = scmp.ne.s32.totalorder %s167, %s168
    %p182 = scmp.eq.s32.totalorder %s28, 3
    %p183 = por %p181, %p182
    %p185 = scmp.ne.s32.totalorder %s168, %s184
    %p186 = scmp.eq.s32.totalorder %s28, 0
    %p187 = por %p185, %p186
    %s188 = ssub.s32 %s30, %s37
    %p189 = scmp.eq.s32.totalorder %s188, 0
    %s191 = sadd.s32 %s190, 1
    %s192 = scalar_select %p189, %s190, %s191
    %p195 = pneg %p189
    %p196 = scmp.eq.s32.totalorder %s22, 3
    %p197 = por %p195, %p196
    %p198 = scmp.ne.s32.totalorder %s190, %s193
    %p199 = scmp.eq.s32.totalorder %s22, 0
    %p200 = por %p198, %p199
    %p201 = scmp.ne.s32.totalorder %s190, %s193
    %p202 = scmp.eq.s32.totalorder %s27, 3
    %p203 = por %p201, %p202
    %p204 = scmp.ne.s32.totalorder %s193, %s194
    %p205 = scmp.eq.s32.totalorder %s27, 0
    %p206 = por %p204, %p205
    %p207 = scmp.ne.s32.totalorder %s193, %s194
    %p208 = scmp.eq.s32.totalorder %s28, 3
    %p209 = por %p207, %p208
    %p211 = scmp.ne.s32.totalorder %s194, %s210
    %p212 = scmp.eq.s32.totalorder %s28, 0
    %p213 = por %p211, %p212
    %s214 = ssub.s32 %s30, %s37
    %p215 = scmp.eq.s32.totalorder %s214, 0
    %s217 = sadd.s32 %s216, 1
    %s218 = scalar_select %p215, %s216, %s217
    %p221 = pneg %p215
    %p222 = scmp.eq.s32.totalorder %s22, 3
    %p223 = por %p221, %p222
    %p224 = scmp.ne.s32.totalorder %s216, %s219
    %p225 = scmp.eq.s32.totalorder %s22, 0
    %p226 = por %p224, %p225
    %p227 = scmp.ne.s32.totalorder %s216, %s219
    %p228 = scmp.eq.s32.totalorder %s27, 3
    %p229 = por %p227, %p228
    %p230 = scmp.ne.s32.totalorder %s219, %s220
    %p231 = scmp.eq.s32.totalorder %s27, 0
    %p232 = por %p230, %p231
    %p233 = scmp.ne.s32.totalorder %s219, %s220
    %p234 = scmp.eq.s32.totalorder %s28, 3
    %p235 = por %p233, %p234
    %p237 = scmp.ne.s32.totalorder %s220, %s236
    %p238 = scmp.eq.s32.totalorder %s28, 0
    %p239 = por %p237, %p238
    %s240 = ssub.s32 %s30, %s37
    %p241 = scmp.eq.s32.totalorder %s240, 0
    %s243 = sadd.s32 %s242, 1
    %s244 = scalar_select %p241, %s242, %s243
    %p247 = pneg %p241
    %p248 = scmp.eq.s32.totalorder %s22, 3
    %p249 = por %p247, %p248
    %p250 = scmp.ne.s32.totalorder %s242, %s245
    %p251 = scmp.eq.s32.totalorder %s22, 0
    %p252 = por %p250, %p251
    %p253 = scmp.ne.s32.totalorder %s242, %s245
    %p254 = scmp.eq.s32.totalorder %s27, 3
    %p255 = por %p253, %p254
    %p256 = scmp.ne.s32.totalorder %s245, %s246
    %p257 = scmp.eq.s32.totalorder %s27, 0
    %p258 = por %p256, %p257
    %p259 = scmp.ne.s32.totalorder %s245, %s246
    %p260 = scmp.eq.s32.totalorder %s28, 3
    %p261 = por %p259, %p260
    %p263 = scmp.ne.s32.totalorder %s246, %s262
    %p264 = scmp.eq.s32.totalorder %s28, 0
    %p265 = por %p263, %p264
    %s266 = ssub.s32 %s30, %s37
    %p267 = scmp.eq.s32.totalorder %s266, 0
    %s269 = sadd.s32 %s268, 1
    %s270 = scalar_select %p267, %s268, %s269
    %p273 = pneg %p267
    %p274 = scmp.eq.s32.totalorder %s22, 3
    %p275 = por %p273, %p274
    %p276 = scmp.ne.s32.totalorder %s268, %s271
    %p277 = scmp.eq.s32.totalorder %s22, 0
    %p278 = por %p276, %p277
    %p279 = scmp.ne.s32.totalorder %s268, %s271
    %p280 = scmp.eq.s32.totalorder %s27, 3
    %p281 = por %p279, %p280
    %p282 = scmp.ne.s32.totalorder %s271, %s272
    %p283 = scmp.eq.s32.totalorder %s27, 0
    %p284 = por %p282, %p283
    %p285 = scmp.ne.s32.totalorder %s271, %s272
    %p286 = scmp.eq.s32.totalorder %s28, 3
    %p287 = por %p285, %p286
    %p289 = scmp.ne.s32.totalorder %s272, %s288
    %p290 = scmp.eq.s32.totalorder %s28, 0
    %p291 = por %p289, %p290
    %s292 = ssub.s32 %s30, %s37
    %p293 = scmp.eq.s32.totalorder %s292, 0
    %s295 = sadd.s32 %s294, 1
    %s296 = scalar_select %p293, %s294, %s295
    %p299 = pneg %p293
    %p300 = scmp.eq.s32.totalorder %s22, 3
    %p301 = por %p299, %p300
    %p302 = scmp.ne.s32.totalorder %s294, %s297
    %p303 = scmp.eq.s32.totalorder %s22, 0
    %p304 = por %p302, %p303
    %p305 = scmp.ne.s32.totalorder %s294, %s297
    %p306 = scmp.eq.s32.totalorder %s27, 3
    %p307 = por %p305, %p306
    %p308 = scmp.ne.s32.totalorder %s297, %s298
    %p309 = scmp.eq.s32.totalorder %s27, 0
    %p310 = por %p308, %p309
    %p311 = scmp.ne.s32.totalorder %s297, %s298
    %p312 = scmp.eq.s32.totalorder %s28, 3
    %p313 = por %p311, %p312
    %p315 = scmp.ne.s32.totalorder %s298, %s314
    %p316 = scmp.eq.s32.totalorder %s28, 0
    %p317 = por %p315, %p316
    %s318 = ssub.s32 %s30, %s37
    %p319 = scmp.eq.s32.totalorder %s318, 0
    %s321 = sadd.s32 %s320, 1
    %s322 = scalar_select %p319, %s320, %s321
    %p325 = pneg %p319
    %p326 = scmp.eq.s32.totalorder %s22, 3
    %p327 = por %p325, %p326
    %p328 = scmp.ne.s32.totalorder %s320, %s323
    %p329 = scmp.eq.s32.totalorder %s22, 0
    %p330 = por %p328, %p329
    %p331 = scmp.ne.s32.totalorder %s320, %s323
    %p332 = scmp.eq.s32.totalorder %s27, 3
    %p333 = por %p331, %p332
    %p334 = scmp.ne.s32.totalorder %s323, %s324
    %p335 = scmp.eq.s32.totalorder %s27, 0
    %p336 = por %p334, %p335
    %p337 = scmp.ne.s32.totalorder %s323, %s324
    %p338 = scmp.eq.s32.totalorder %s28, 3
    %p339 = por %p337, %p338
    %p341 = scmp.ne.s32.totalorder %s324, %s340
    %p342 = scmp.eq.s32.totalorder %s28, 0
    %p343 = por %p341, %p342
    %s344 = ssub.s32 %s30, %s37
    %p345 = scmp.eq.s32.totalorder %s344, 0
    %s347 = sadd.s32 %s346, 1
    %s348 = scalar_select %p345, %s346, %s347
    %p351 = pneg %p345
    %p352 = scmp.eq.s32.totalorder %s22, 3
    %p353 = por %p351, %p352
    %p354 = scmp.ne.s32.totalorder %s346, %s349
    %p355 = scmp.eq.s32.totalorder %s22, 0
    %p356 = por %p354, %p355
    %p357 = scmp.ne.s32.totalorder %s346, %s349
    %p358 = scmp.eq.s32.totalorder %s27, 3
    %p359 = por %p357, %p358
    %p360 = scmp.ne.s32.totalorder %s349, %s350
    %p361 = scmp.eq.s32.totalorder %s27, 0
    %p362 = por %p360, %p361
    %p363 = scmp.ne.s32.totalorder %s349, %s350
    %p364 = scmp.eq.s32.totalorder %s28, 3
    %p365 = por %p363, %p364
    %p367 = scmp.ne.s32.totalorder %s350, %s366
    %p368 = scmp.eq.s32.totalorder %s28, 0
    %p369 = por %p367, %p368
    %s370 = ssub.s32 %s30, %s37
    %p371 = scmp.eq.s32.totalorder %s370, 0
    %s373 = sadd.s32 %s372, 1
    %s374 = scalar_select %p371, %s372, %s373
    %p377 = pneg %p371
    %p378 = scmp.eq.s32.totalorder %s22, 3
    %p379 = por %p377, %p378
    %p380 = scmp.ne.s32.totalorder %s372, %s375
    %p381 = scmp.eq.s32.totalorder %s22, 0
    %p382 = por %p380, %p381
    %p383 = scmp.ne.s32.totalorder %s372, %s375
    %p384 = scmp.eq.s32.totalorder %s27, 3
    %p385 = por %p383, %p384
    %p386 = scmp.ne.s32.totalorder %s375, %s376
    %p387 = scmp.eq.s32.totalorder %s27, 0
    %p388 = por %p386, %p387
    %p389 = scmp.ne.s32.totalorder %s375, %s376
    %p390 = scmp.eq.s32.totalorder %s28, 3
    %p391 = por %p389, %p390
    %p393 = scmp.ne.s32.totalorder %s376, %s392
    %p394 = scmp.eq.s32.totalorder %s28, 0
    %p395 = por %p393, %p394
    %s396 = ssub.s32 %s30, %s37
    %p397 = scmp.eq.s32.totalorder %s396, 0
    %s399 = sadd.s32 %s398, 1
    %s400 = scalar_select %p397, %s398, %s399
    %p403 = pneg %p397
    %p404 = scmp.eq.s32.totalorder %s22, 3
    %p405 = por %p403, %p404
    %p406 = scmp.ne.s32.totalorder %s398, %s401
    %p407 = scmp.eq.s32.totalorder %s22, 0
    %p408 = por %p406, %p407
    %p409 = scmp.ne.s32.totalorder %s398, %s401
    %p410 = scmp.eq.s32.totalorder %s27, 3
    %p411 = por %p409, %p410
    %p412 = scmp.ne.s32.totalorder %s401, %s402
    %p413 = scmp.eq.s32.totalorder %s27, 0
    %p414 = por %p412, %p413
    %p415 = scmp.ne.s32.totalorder %s401, %s402
    %p416 = scmp.eq.s32.totalorder %s28, 3
    %p417 = por %p415, %p416
    %p419 = scmp.ne.s32.totalorder %s402, %s418
    %p420 = scmp.eq.s32.totalorder %s28, 0
    %p421 = por %p419, %p420
    %s422 = ssub.s32 %s30, %s37
    %p423 = scmp.eq.s32.totalorder %s422, 0
    %s425 = sadd.s32 %s424, 1
    %s426 = scalar_select %p423, %s424, %s425
    %p429 = pneg %p423
    %p430 = scmp.eq.s32.totalorder %s22, 3
    %p431 = por %p429, %p430
    %p432 = scmp.ne.s32.totalorder %s424, %s427
    %p433 = scmp.eq.s32.totalorder %s22, 0
    %p434 = por %p432, %p433
    %p435 = scmp.ne.s32.totalorder %s424, %s427
    %p436 = scmp.eq.s32.totalorder %s27, 3
    %p437 = por %p435, %p436
    %p438 = scmp.ne.s32.totalorder %s427, %s428
    %p439 = scmp.eq.s32.totalorder %s27, 0
    %p440 = por %p438, %p439
    %p441 = scmp.ne.s32.totalorder %s427, %s428
    %p442 = scmp.eq.s32.totalorder %s28, 3
    %p443 = por %p441, %p442
    %p445 = scmp.ne.s32.totalorder %s428, %s444
    %p446 = scmp.eq.s32.totalorder %s28, 0
    %p447 = por %p445, %p446
    %s448 = ssub.s32 %s29, %s41
    %p449 = scmp.eq.s32.totalorder %s448, 0
    %s451 = sadd.s32 %s450, 1
    %s452 = scalar_select %p449, %s450, %s451
    %p455 = pneg %p449
    %p456 = scmp.eq.s32.totalorder %s22, 3
    %p457 = por %p455, %p456
    %p458 = scmp.ne.s32.totalorder %s450, %s453
    %p459 = scmp.eq.s32.totalorder %s22, 0
    %p460 = por %p458, %p459
    %p461 = scmp.ne.s32.totalorder %s450, %s453
    %p462 = scmp.eq.s32.totalorder %s27, 3
    %p463 = por %p461, %p462
    %p464 = scmp.ne.s32.totalorder %s453, %s454
    %p465 = scmp.eq.s32.totalorder %s27, 0
    %p466 = por %p464, %p465
    %p467 = scmp.ne.s32.totalorder %s453, %s454
    %p468 = scmp.eq.s32.totalorder %s28, 3
    %p469 = por %p467, %p468
    %p471 = scmp.ne.s32.totalorder %s454, %s470
    %p472 = scmp.eq.s32.totalorder %s28, 0
    %p473 = por %p471, %p472
    %p474 = scmp.le.s32.totalorder 1, %s22
    %p475 = scmp.lt.s32.totalorder %s22, 5
    %p476 = pnand %p474, %p475
    %p477 = pneg %p476
    // Predicated region
    $region9: #{dpr_question_encoder_forward.1} parent=5 // pred_check
      _
    $region10: #{dpr_question_encoder_forward.1} parent=5 // pred_check_branch
      %479 = sbr.rel (%p476) target = $region12
    $region11: #{dpr_question_encoder_forward.1} parent=5 // pred_region
      %s480 = ssub.s32 %s22, 1
      // Predicated region
      $region13: #{dpr_question_encoder_forward.1} parent=11 // pred_check
        %p481 = pneg %p107
      $region14: #{dpr_question_encoder_forward.1} parent=11 // pred_check_branch
        %483 = sbr.rel (%p481) target = $region16
      $region15: #{dpr_question_encoder_forward.1} parent=11 // pred_region
        _
      $region16: #{dpr_question_encoder_forward.1} parent=11 // pred_fallthru
        _
      // Predicated region
      $region17: #{dpr_question_encoder_forward.1} parent=11 // pred_check
        %p484 = pneg %p128
      $region18: #{dpr_question_encoder_forward.1} parent=11 // pred_check_branch
        %486 = sbr.rel (%p484) target = $region20
      $region19: #{dpr_question_encoder_forward.1} parent=11 // pred_region
        _
      $region20: #{dpr_question_encoder_forward.1} parent=11 // pred_fallthru
        _
    $region12: #{dpr_question_encoder_forward.1} parent=5 // pred_fallthru
      _
    %p487 = scmp.lt.s32.totalorder %s22, 4
    // Predicated region
    $region21: #{dpr_question_encoder_forward.1} parent=5 // pred_check
      %p488 = pneg %p487
    $region22: #{dpr_question_encoder_forward.1} parent=5 // pred_check_branch
      %490 = sbr.rel (%p488) target = $region24
    $region23: #{dpr_question_encoder_forward.1} parent=5 // pred_region
      // Predicated region
      $region25: #{dpr_question_encoder_forward.1} parent=23 // pred_check
        %p491 = pneg %p54
      $region26: #{dpr_question_encoder_forward.1} parent=23 // pred_check_branch
        %493 = sbr.rel (%p491) target = $region28
      $region27: #{dpr_question_encoder_forward.1} parent=23 // pred_region
        %p494 = scmp.lt.s32.totalorder %s29, 1
        %s495 = scalar_select %p494, %s29, 1
        %s496 = smul.addr %s495, 8
        %s497 = scalar_lea.vmem %s0, %s496
      $region28: #{dpr_question_encoder_forward.1} parent=23 // pred_fallthru
        _
      // Predicated region
      $region29: #{dpr_question_encoder_forward.1} parent=23 // pred_check
        %p498 = pneg %p80
      $region30: #{dpr_question_encoder_forward.1} parent=23 // pred_check_branch
        %500 = sbr.rel (%p498) target = $region32
      $region31: #{dpr_question_encoder_forward.1} parent=23 // pred_region
        %p501 = scmp.lt.s32.totalorder %s29, 1
        %s502 = scalar_select %p501, %s29, 1
        %s503 = scalar_lea.vmem %s1, %s502
      $region32: #{dpr_question_encoder_forward.1} parent=23 // pred_fallthru
        _
      // Predicated region
      $region33: #{dpr_question_encoder_forward.1} parent=23 // pred_check
        %p504 = pneg %p148
      $region34: #{dpr_question_encoder_forward.1} parent=23 // pred_check_branch
        %506 = sbr.rel (%p504) target = $region36
      $region35: #{dpr_question_encoder_forward.1} parent=23 // pred_region
        %p507 = scmp.lt.s32.totalorder %s30, 1
        %s508 = scalar_select %p507, %s30, 1
        %s509 = smul.addr %s508, 4
        %s510 = smul.addr %s509, 4
        %s511 = scalar_lea.vmem %s4, %s510
      $region36: #{dpr_question_encoder_forward.1} parent=23 // pred_fallthru
        _
      // Predicated region
      $region37: #{dpr_question_encoder_forward.1} parent=23 // pred_check
        %p512 = pneg %p174
      $region38: #{dpr_question_encoder_forward.1} parent=23 // pred_check_branch
        %514 = sbr.rel (%p512) target = $region40
      $region39: #{dpr_question_encoder_forward.1} parent=23 // pred_region
        %p515 = scmp.lt.s32.totalorder %s30, 1
        %s516 = scalar_select %p515, %s30, 1
        %s517 = scalar_lea.vmem %s5, %s516
      $region40: #{dpr_question_encoder_forward.1} parent=23 // pred_fallthru
        _
      // Predicated region
      $region41: #{dpr_question_encoder_forward.1} parent=23 // pred_check
        %p518 = pneg %p200
      $region42: #{dpr_question_encoder_forward.1} parent=23 // pred_check_branch
        %520 = sbr.rel (%p518) target = $region44
      $region43: #{dpr_question_encoder_forward.1} parent=23 // pred_region
        %p521 = scmp.lt.s32.totalorder %s30, 1
        %s522 = scalar_select %p521, %s30, 1
        %s523 = smul.addr %s522, 4
        %s524 = smul.addr %s523, 4
        %s525 = scalar_lea.vmem %s6, %s524
      $region44: #{dpr_question_encoder_forward.1} parent=23 // pred_fallthru
        _
      // Predicated region
      $region45: #{dpr_question_encoder_forward.1} parent=23 // pred_check
        %p526 = pneg %p226
      $region46: #{dpr_question_encoder_forward.1} parent=23 // pred_check_branch
        %528 = sbr.rel (%p526) target = $region48
      $region47: #{dpr_question_encoder_forward.1} parent=23 // pred_region
        %p529 = scmp.lt.s32.totalorder %s30, 1
        %s530 = scalar_select %p529, %s30, 1
        %s531 = scalar_lea.vmem %s7, %s530
      $region48: #{dpr_question_encoder_forward.1} parent=23 // pred_fallthru
        _
      // Predicated region
      $region49: #{dpr_question_encoder_forward.1} parent=23 // pred_check
        %p532 = pneg %p252
      $region50: #{dpr_question_encoder_forward.1} parent=23 // pred_check_branch
        %534 = sbr.rel (%p532) target = $region52
      $region51: #{dpr_question_encoder_forward.1} parent=23 // pred_region
        %p535 = scmp.lt.s32.totalorder %s30, 1
        %s536 = scalar_select %p535, %s30, 1
        %s537 = scalar_lea.vmem %s8, %s536
      $region52: #{dpr_question_encoder_forward.1} parent=23 // pred_fallthru
        _
      // Predicated region
      $region53: #{dpr_question_encoder_forward.1} parent=23 // pred_check
        %p538 = pneg %p278
      $region54: #{dpr_question_encoder_forward.1} parent=23 // pred_check_branch
        %540 = sbr.rel (%p538) target = $region56
      $region55: #{dpr_question_encoder_forward.1} parent=23 // pred_region
        %p541 = scmp.lt.s32.totalorder %s30, 1
        %s542 = scalar_select %p541, %s30, 1
        %s543 = scalar_lea.vmem %s9, %s542
      $region56: #{dpr_question_encoder_forward.1} parent=23 // pred_fallthru
        _
      // Predicated region
      $region57: #{dpr_question_encoder_forward.1} parent=23 // pred_check
        %p544 = pneg %p304
      $region58: #{dpr_question_encoder_forward.1} parent=23 // pred_check_branch
        %546 = sbr.rel (%p544) target = $region60
      $region59: #{dpr_question_encoder_forward.1} parent=23 // pred_region
        %p547 = scmp.lt.s32.totalorder %s30, 1
        %s548 = scalar_select %p547, %s30, 1
        %s549 = smul.addr %s548, 4
        %s550 = smul.addr %s549, 4
        %s551 = scalar_lea.vmem %s10, %s550
      $region60: #{dpr_question_encoder_forward.1} parent=23 // pred_fallthru
        _
      // Predicated region
      $region61: #{dpr_question_encoder_forward.1} parent=23 // pred_check
        %p552 = pneg %p330
      $region62: #{dpr_question_encoder_forward.1} parent=23 // pred_check_branch
        %554 = sbr.rel (%p552) target = $region64
      $region63: #{dpr_question_encoder_forward.1} parent=23 // pred_region
        %p555 = scmp.lt.s32.totalorder %s30, 1
        %s556 = scalar_select %p555, %s30, 1
        %s557 = scalar_lea.vmem %s11, %s556
      $region64: #{dpr_question_encoder_forward.1} parent=23 // pred_fallthru
        _
      // Predicated region
      $region65: #{dpr_question_encoder_forward.1} parent=23 // pred_check
        %p558 = pneg %p356
      $region66: #{dpr_question_encoder_forward.1} parent=23 // pred_check_branch
        %560 = sbr.rel (%p558) target = $region68
      $region67: #{dpr_question_encoder_forward.1} parent=23 // pred_region
        %p561 = scmp.lt.s32.totalorder %s30, 1
        %s562 = scalar_select %p561, %s30, 1
        %s563 = smul.addr %s562, 8
        %s564 = smul.addr %s563, 4
        %s565 = scalar_lea.vmem %s12, %s564
      $region68: #{dpr_question_encoder_forward.1} parent=23 // pred_fallthru
        _
      // Predicated region
      $region69: #{dpr_question_encoder_forward.1} parent=23 // pred_check
        %p566 = pneg %p382
      $region70: #{dpr_question_encoder_forward.1} parent=23 // pred_check_branch
        %568 = sbr.rel (%p566) target = $region72
      $region71: #{dpr_question_encoder_forward.1} parent=23 // pred_region
        %p569 = scmp.lt.s32.totalorder %s30, 1
        %s570 = scalar_select %p569, %s30, 1
        %s571 = scalar_lea.vmem %s13, %s570
      $region72: #{dpr_question_encoder_forward.1} parent=23 // pred_fallthru
        _
      // Predicated region
      $region73: #{dpr_question_encoder_forward.1} parent=23 // pred_check
        %p572 = pneg %p408
      $region74: #{dpr_question_encoder_forward.1} parent=23 // pred_check_branch
        %574 = sbr.rel (%p572) target = $region76
      $region75: #{dpr_question_encoder_forward.1} parent=23 // pred_region
        %p575 = scmp.lt.s32.totalorder %s30, 1
        %s576 = scalar_select %p575, %s30, 1
        %s577 = scalar_lea.vmem %s14, %s576
      $region76: #{dpr_question_encoder_forward.1} parent=23 // pred_fallthru
        _
      // Predicated region
      $region77: #{dpr_question_encoder_forward.1} parent=23 // pred_check
        %p578 = pneg %p434
      $region78: #{dpr_question_encoder_forward.1} parent=23 // pred_check_branch
        %580 = sbr.rel (%p578) target = $region80
      $region79: #{dpr_question_encoder_forward.1} parent=23 // pred_region
        %p581 = scmp.lt.s32.totalorder %s30, 1
        %s582 = scalar_select %p581, %s30, 1
        %s583 = scalar_lea.vmem %s15, %s582
      $region80: #{dpr_question_encoder_forward.1} parent=23 // pred_fallthru
        _
    $region24: #{dpr_question_encoder_forward.1} parent=5 // pred_fallthru
      _
    %p584 = scmp.le.s32.totalorder 1, %s22
    %p585 = scmp.lt.s32.totalorder %s22, 5
    %p586 = pnand %p584, %p585
    %p587 = pneg %p586
    // Predicated region
    $region81: #{dpr_question_encoder_forward.1} parent=5 // pred_check
      _
    $region82: #{dpr_question_encoder_forward.1} parent=5 // pred_check_branch
      %589 = sbr.rel (%p586) target = $region84
    $region83: #{dpr_question_encoder_forward.1} parent=5 // pred_region
      %s590 = ssub.s32 %s22, 1
      %p591 = scmp.lt.s32.totalorder %s31, 1
      %s592 = scalar_select %p591, %s31, 1
      %s593 = smul.addr %s592, 8
      %s594 = scalar_lea.vmem %s0, %s593
      %p595 = pneg %p60
      %p596 = pneg %p57
      %p597 = scmp.lt.s32.totalorder %s31, 1
      %s598 = scalar_select %p597, %s31, 1
      %s599 = scalar_lea.vmem %s1, %s598
      %p600 = pneg %p86
      %p601 = pneg %p83
      %p602 = pneg %p107
      %p603 = pneg %p104
      %p604 = pneg %p128
      %p605 = pneg %p125
      %p606 = scmp.lt.s32.totalorder %s32, 1
      %s607 = scalar_select %p606, %s32, 1
      %s608 = smul.addr %s607, 4
      %s609 = smul.addr %s608, 4
      %s610 = scalar_lea.vmem %s4, %s609
      %p611 = pneg %p154
      %p612 = pneg %p151
      %p613 = scmp.lt.s32.totalorder %s32, 1
      %s614 = scalar_select %p613, %s32, 1
      %s615 = scalar_lea.vmem %s5, %s614
      %p616 = pneg %p180
      %p617 = pneg %p177
      %p618 = scmp.lt.s32.totalorder %s32, 1
      %s619 = scalar_select %p618, %s32, 1
      %s620 = smul.addr %s619, 4
      %s621 = smul.addr %s620, 4
      %s622 = scalar_lea.vmem %s6, %s621
      %p623 = pneg %p206
      %p624 = pneg %p203
      %p625 = scmp.lt.s32.totalorder %s32, 1
      %s626 = scalar_select %p625, %s32, 1
      %s627 = scalar_lea.vmem %s7, %s626
      %p628 = pneg %p232
      %p629 = pneg %p229
      %p630 = scmp.lt.s32.totalorder %s32, 1
      %s631 = scalar_select %p630, %s32, 1
      %s632 = scalar_lea.vmem %s8, %s631
      %p633 = pneg %p258
      %p634 = pneg %p255
      %p635 = scmp.lt.s32.totalorder %s32, 1
      %s636 = scalar_select %p635, %s32, 1
      %s637 = scalar_lea.vmem %s9, %s636
      %p638 = pneg %p284
      %p639 = pneg %p281
      %p640 = scmp.lt.s32.totalorder %s32, 1
      %s641 = scalar_select %p640, %s32, 1
      %s642 = smul.addr %s641, 4
      %s643 = smul.addr %s642, 4
      %s644 = scalar_lea.vmem %s10, %s643
      %p645 = pneg %p310
      %p646 = pneg %p307
      %p647 = scmp.lt.s32.totalorder %s32, 1
      %s648 = scalar_select %p647, %s32, 1
      %s649 = scalar_lea.vmem %s11, %s648
      %p650 = pneg %p336
      %p651 = pneg %p333
      %p652 = scmp.lt.s32.totalorder %s32, 1
      %s653 = scalar_select %p652, %s32, 1
      %s654 = smul.addr %s653, 8
      %s655 = smul.addr %s654, 4
      %s656 = scalar_lea.vmem %s12, %s655
      %p657 = pneg %p362
      %p658 = pneg %p359
      %p659 = scmp.lt.s32.totalorder %s32, 1
      %s660 = scalar_select %p659, %s32, 1
      %s661 = scalar_lea.vmem %s13, %s660
      %p662 = pneg %p388
      %p663 = pneg %p385
      %p664 = scmp.lt.s32.totalorder %s32, 1
      %s665 = scalar_select %p664, %s32, 1
      %s666 = scalar_lea.vmem %s14, %s665
      %p667 = pneg %p414
      %p668 = pneg %p411
      %p669 = scmp.lt.s32.totalorder %s32, 1
      %s670 = scalar_select %p669, %s32, 1
      %s671 = scalar_lea.vmem %s15, %s670
      %p672 = pneg %p440
      %p673 = pneg %p437
      %p674 = pneg %p466
      %p675 = pneg %p463
      %p676 = scmp.lt.s32.totalorder %s31, 1
      %s677 = scalar_select %p676, %s31, 1
      %s678 = smul.addr %s677, 8
      %s679 = scalar_lea.vmem %s16, %s678
      %p680 = scmp.lt.s32.totalorder %s31, 1
      %s681 = scalar_select %p680, %s31, 1
      %s682 = smul.addr %s681, 8
      %s683 = scalar_lea.vmem %s0, %s682
      %p684 = scmp.lt.s32.totalorder %s31, 1
      %s685 = scalar_select %p684, %s31, 1
      %s686 = scalar_lea.vmem %s1, %s685
      %p687 = scmp.lt.s32.totalorder %s32, 1
      %s688 = scalar_select %p687, %s32, 1
      %s689 = smul.addr %s688, 4
      %s690 = smul.addr %s689, 4
      %s691 = scalar_lea.vmem %s4, %s690
      %p692 = scmp.lt.s32.totalorder %s32, 1
      %s693 = scalar_select %p692, %s32, 1
      %s694 = scalar_lea.vmem %s5, %s693
      %p695 = scmp.lt.s32.totalorder %s32, 1
      %s696 = scalar_select %p695, %s32, 1
      %s697 = smul.addr %s696, 4
      %s698 = smul.addr %s697, 4
      %s699 = scalar_lea.vmem %s6, %s698
      %p700 = scmp.lt.s32.totalorder %s32, 1
      %s701 = scalar_select %p700, %s32, 1
      %s702 = scalar_lea.vmem %s7, %s701
      %p703 = scmp.lt.s32.totalorder %s32, 1
      %s704 = scalar_select %p703, %s32, 1
      %s705 = scalar_lea.vmem %s8, %s704
      %p706 = scmp.lt.s32.totalorder %s32, 1
      %s707 = scalar_select %p706, %s32, 1
      %s708 = scalar_lea.vmem %s9, %s707
      %p709 = scmp.lt.s32.totalorder %s32, 1
      %s710 = scalar_select %p709, %s32, 1
      %s711 = smul.addr %s710, 4
      %s712 = smul.addr %s711, 4
      %s713 = scalar_lea.vmem %s10, %s712
      %p714 = scmp.lt.s32.totalorder %s32, 1
      %s715 = scalar_select %p714, %s32, 1
      %s716 = scalar_lea.vmem %s11, %s715
      %p717 = scmp.lt.s32.totalorder %s32, 1
      %s718 = scalar_select %p717, %s32, 1
      %s719 = smul.addr %s718, 8
      %s720 = smul.addr %s719, 4
      %s721 = scalar_lea.vmem %s12, %s720
      %p722 = scmp.lt.s32.totalorder %s32, 1
      %s723 = scalar_select %p722, %s32, 1
      %s724 = scalar_lea.vmem %s13, %s723
      %p725 = scmp.lt.s32.totalorder %s32, 1
      %s726 = scalar_select %p725, %s32, 1
      %s727 = scalar_lea.vmem %s14, %s726
      %p728 = scmp.lt.s32.totalorder %s32, 1
      %s729 = scalar_select %p728, %s32, 1
      %s730 = scalar_lea.vmem %s15, %s729
      %p731 = scmp.lt.s32.totalorder %s31, 1
      %s732 = scalar_select %p731, %s31, 1
      %s733 = smul.addr %s732, 8
      %s734 = scalar_lea.vmem %s16, %s733
      %p736 = scmp.eq.s32.totalorder %s32, 0
      // Predicated region
      $region85: #{dpr_question_encoder_forward.1} parent=83 // pred_check
        %p737 = pneg %p736
      $region86: #{dpr_question_encoder_forward.1} parent=83 // pred_check_branch
        %739 = sbr.rel (%p737) target = $region88
      $region87: #{dpr_question_encoder_forward.1} parent=83 // pred_region
        %v740 = vld [vmem:[%s683] sm:$0xff]
        %vm741 = vcmask 261120
        %v742 = vsel %vm741, %v740, 0.0
        %743 = vadd.xlane.f32.xlu0 %v742
        %v744 = vpop.xlane.xlu0 %743
        %v745 = vrcp.pop 32.0
        %v746 = vmul.f32 %v744, %v745
        %v747 = vsub.f32 %v740, %v746
        %v748 = vmul.f32 %v747, %v747
        %v749 = vsel %vm741, %v748, 0.0
        %750 = vadd.xlane.f32.xlu0 %v749
        %v751 = vpop.xlane.xlu0 %750
        %v752 = vmul.f32 %v751, %v745
        %v753 = vadd.f32 %v752, 1e-12
        %v754 = vrsqrt.pop %v753
        %v755 = vmul.f32 %v747, %v754
        %v756 = vld [vmem:[%s2] sm:$0x1]
        %v758 = vlaneseq
        %v759 = vshrl.u32 %v758, 7
        %v760 = vsub.s32 0, %v759
        %v761 = vrot.slane %v756, %v760
        %v763 = vmul.f32 %v755, %v761
        %v764 = vld [vmem:[%s3] sm:$0x1]
        %v766 = vlaneseq
        %v767 = vshrl.u32 %v766, 7
        %v768 = vsub.s32 0, %v767
        %v769 = vrot.slane %v764, %v768
        %v771 = vadd.f32 %v763, %v769
        %v772 = vpack.c.bf16 %v771, %v771
        %vm773 = vcmask 257024
        %774 = vst.msk [vmem:[#allocation2] sm:$0xf] %vm773, %v772
      $region88: #{dpr_question_encoder_forward.1} parent=83 // pred_fallthru
        _
      %v775 = vld [vmem:[#allocation2] sm:$0xf]
      %v776 = vunpack.c.l.bf16 %v775
      %v777 = vld [vmem:[%s691] sm:$0xf]
      %v778 = vld [vmem:[%s691 + $0x4] sm:$0xf]
      %v779 = vld [vmem:[%s691 + $0x8] sm:$0xf]
      %v780 = vld [vmem:[%s691 + $0xc] sm:$0xf]
      %v781 = vld [vmem:[%s694] sm:$0x1]
      %v783 = vlaneseq
      %v784 = vshrl.u32 %v783, 7
      %v785 = vsub.s32 0, %v784
      %v786 = vrot.slane %v781, %v785
      %v792 = vunpack.c.l.b16 %v777
      %v793 = vunpack.c.l.b16 %v778
      %v794 = vunpack.c.l.b16 %v779
      %v795 = vunpack.c.l.b16 %v780
      %v796 = vpack.c.b16 %v793, %v792
      %v797 = vpack.c.b16 %v795, %v794
      %vm800 = vcmask 261120
      %v802 = vsel %vm800, %v775, 0
      %804 = vmatprep.subr.bf16.mxu0 0
      %805 = vmatpush1.bf16.msra.mxu0 0
      %806 = vmatprep.subr.bf16.mxu0 0
      %807 = vmatpush1.bf16.msra.mxu0 0
      %808 = vmatprep.subr.bf16.mxu0 0
      %809 = vmatpush1.bf16.msra.mxu0 0
      %810 = vmatprep.subr.bf16.mxu0 0
      %811 = vmatpush1.bf16.msra.mxu0 0
      %812 = vmatprep.subr.bf16.mxu0 0
      %813 = vmatpush1.bf16.msra.mxu0 0
      %814 = vmatprep.subr.bf16.mxu0 0
      %815 = vmatpush1.bf16.msra.mxu0 0
      %816 = vmatprep.subr.bf16.mxu0 0
      %817 = vmatpush1.bf16.msra.mxu0 %v797
      %818 = vmatprep.subr.bf16.mxu0 0
      %819 = vmatpush1.bf16.msra.mxu0 %v796
      %820 = vmatprep.subr.bf16.mxu0 0
      %821 = vmatpush2.bf16.msra.mxu0 0
      %822 = vmatprep.subr.bf16.mxu0 0
      %823 = vmatpush2.bf16.msra.mxu0 0
      %824 = vmatprep.subr.bf16.mxu0 0
      %825 = vmatpush2.bf16.msra.mxu0 0
      %826 = vmatprep.subr.bf16.mxu0 0
      %827 = vmatpush2.bf16.msra.mxu0 0
      %828 = vmatprep.subr.bf16.mxu0 0
      %829 = vmatpush2.bf16.msra.mxu0 0
      %830 = vmatprep.subr.bf16.mxu0 0
      %831 = vmatpush2.bf16.msra.mxu0 0
      %832 = vmatprep.subr.bf16.mxu0 0
      %833 = vmatpush2.bf16.msra.mxu0 0
      %834 = vmatprep.subr.bf16.mxu0 0
      %835 = vmatpush2.bf16.msra.mxu0 0
      %836 = vmatprep.mubr.bf16.mxu0 0
      %837 = vmatmul.mubr.bf16.gmra.mxu0 %v802
      %v838 = vpop.f32.mrf.mxu0
      %v839 = vadd.f32 %v786, %v838
      %v840 = vpop.f32.mrf.mxu0
      %v841 = vpop.f32.mrf.mxu0
      %v842 = vpop.f32.mrf.mxu0
      %843 = vdwg.mxu0
      %v844 = vmul.f32 %v839, 0.25
      %v845 = vld [vmem:[%s686] sm:$0x1]
      %v846 = vpack.c.bf16 %v844, %v844
      %v847 = vpack.c.bf16 %v839, %v839
      %v849 = vlaneseq
      %v850 = vshrl.u32 %v849, 7
      %v851 = vsub.s32 0, %v850
      %v852 = vrot.slane %v845, %v851
      %855 = vrot.lane.b32.xlu0 %v847, 96
      %v856 = vpop.permute.xlu0 %855
      %vm857 = vcmask 130048
      %v859 = vsel %vm857, %v846, 0
      %v862 = vsel %vm857, %v856, 0
      %864 = vmatprep.subr.bf16.mxu0 0
      %865 = vmatpush1.bf16.xpose.msra.mxu0 0
      %866 = vmatprep.subr.bf16.mxu0 0
      %867 = vmatpush1.bf16.xpose.msra.mxu0 0
      %868 = vmatprep.subr.bf16.mxu0 0
      %869 = vmatpush1.bf16.xpose.msra.mxu0 0
      %870 = vmatprep.subr.bf16.mxu0 0
      %871 = vmatpush1.bf16.xpose.msra.mxu0 0
      %872 = vmatprep.subr.bf16.mxu0 0
      %873 = vmatpush1.bf16.xpose.msra.mxu0 0
      %874 = vmatprep.subr.bf16.mxu0 0
      %875 = vmatpush1.bf16.xpose.msra.mxu0 0
      %876 = vmatprep.subr.bf16.mxu0 0
      %877 = vmatpush1.bf16.xpose.msra.mxu0 0
      %878 = vmatprep.subr.bf16.mxu0 0
      %879 = vmatpush1.bf16.xpose.msra.mxu0 %v862
      %880 = vmatprep.subr.bf16.mxu0 0
      %881 = vmatpush2.bf16.xpose.msra.mxu0 0
      %882 = vmatprep.subr.bf16.mxu0 0
      %883 = vmatpush2.bf16.xpose.msra.mxu0 0
      %884 = vmatprep.subr.bf16.mxu0 0
      %885 = vmatpush2.bf16.xpose.msra.mxu0 0
      %886 = vmatprep.subr.bf16.mxu0 0
      %887 = vmatpush2.bf16.xpose.msra.mxu0 0
      %888 = vmatprep.subr.bf16.mxu0 0
      %889 = vmatpush2.bf16.xpose.msra.mxu0 0
      %890 = vmatprep.subr.bf16.mxu0 0
      %891 = vmatpush2.bf16.xpose.msra.mxu0 0
      %892 = vmatprep.subr.bf16.mxu0 0
      %893 = vmatpush2.bf16.xpose.msra.mxu0 0
      %894 = vmatprep.subr.bf16.mxu0 0
      %895 = vmatpush2.bf16.xpose.msra.mxu0 0
      %896 = vmatprep.mubr.bf16.mxu0 0
      %897 = vmatmul.mubr.bf16.gmra.mxu0 %v859
      %v898 = vpop.f32.mrf.mxu0
      %v899 = vadd.f32 %v852, %v898
      %v900 = vpop.f32.mrf.mxu0
      %v901 = vpop.f32.mrf.mxu0
      %v902 = vpop.f32.mrf.mxu0
      %903 = vdwg.mxu0
      %vm904 = vcmask 64512
      %v905 = vsel %vm904, %v899, -inf
      %906 = vmax.xlane.f32.xlu0 %v905
      %v907 = vpop.xlane.xlu0 %906
      %v908 = vsub.f32 %v899, %v907
      %v909 = vmul.f32 %v908, 1.442695
      %v910 = vpow.pop %v909
      %v911 = vsel %vm904, %v910, 0.0
      %912 = vadd.xlane.f32.xlu0 %v911
      %v913 = vpop.xlane.xlu0 %912
      %v914 = vrcp.pop %v913
      %v915 = vmul.f32 %v910, %v914
      %v916 = vpack.c.bf16 %v915, %v915
      %917 = vrot.lane.b32.xlu0 %v847, 64
      %v918 = vpop.permute.xlu0 %917
      %v920 = vsel %vm904, %v916, 0
      %vm922 = vcmask 1043456
      %v924 = vsel %vm922, %v918, 0
      %926 = vmatprep.subr.bf16.mxu0 0
      %927 = vmatpush1.bf16.msra.mxu0 0
      %928 = vmatprep.subr.bf16.mxu0 0
      %929 = vmatpush1.bf16.msra.mxu0 0
      %930 = vmatprep.subr.bf16.mxu0 0
      %931 = vmatpush1.bf16.msra.mxu0 0
      %932 = vmatprep.subr.bf16.mxu0 0
      %933 = vmatpush1.bf16.msra.mxu0 0
      %934 = vmatprep.subr.bf16.mxu0 0
      %935 = vmatpush1.bf16.msra.mxu0 0
      %936 = vmatprep.subr.bf16.mxu0 0
      %937 = vmatpush1.bf16.msra.mxu0 0
      %938 = vmatprep.subr.bf16.mxu0 0
      %939 = vmatpush1.bf16.msra.mxu0 0
      %940 = vmatprep.subr.bf16.mxu0 0
      %941 = vmatpush1.bf16.msra.mxu0 %v924
      %942 = vmatprep.subr.bf16.mxu0 0
      %943 = vmatpush2.bf16.msra.mxu0 0
      %944 = vmatprep.subr.bf16.mxu0 0
      %945 = vmatpush2.bf16.msra.mxu0 0
      %946 = vmatprep.subr.bf16.mxu0 0
      %947 = vmatpush2.bf16.msra.mxu0 0
      %948 = vmatprep.subr.bf16.mxu0 0
      %949 = vmatpush2.bf16.msra.mxu0 0
      %950 = vmatprep.subr.bf16.mxu0 0
      %951 = vmatpush2.bf16.msra.mxu0 0
      %952 = vmatprep.subr.bf16.mxu0 0
      %953 = vmatpush2.bf16.msra.mxu0 0
      %954 = vmatprep.subr.bf16.mxu0 0
      %955 = vmatpush2.bf16.msra.mxu0 0
      %956 = vmatprep.subr.bf16.mxu0 0
      %957 = vmatpush2.bf16.msra.mxu0 0
      %958 = vmatprep.mubr.bf16.mxu0 0
      %959 = vmatmul.mubr.bf16.gmra.mxu0 %v920
      %v960 = vpop.f32.mrf.mxu0
      %v961 = vadd.f32 0.0, %v960
      %v962 = vpop.f32.mrf.mxu0
      %v963 = vpop.f32.mrf.mxu0
      %v964 = vpop.f32.mrf.mxu0
      %965 = vdwg.mxu0
      %v966 = vpack.c.bf16 %v961, %v961
      %vm967 = vcmask 125952
      %968 = vst.msk [vmem:[#allocation3] sm:$0xf] %vm967, %v966
      %970 = vrot.lane.b32.xlu0 %v846, 112
      %v971 = vpop.permute.xlu0 %970
      %972 = vrot.lane.b32.xlu0 %v847, 80
      %v973 = vpop.permute.xlu0 %972
      %v975 = vsel %vm857, %v971, 0
      %v978 = vsel %vm857, %v973, 0
      %980 = vmatprep.subr.bf16.mxu0 0
      %981 = vmatpush1.bf16.xpose.msra.mxu0 0
      %982 = vmatprep.subr.bf16.mxu0 0
      %983 = vmatpush1.bf16.xpose.msra.mxu0 0
      %984 = vmatprep.subr.bf16.mxu0 0
      %985 = vmatpush1.bf16.xpose.msra.mxu0 0
      %986 = vmatprep.subr.bf16.mxu0 0
      %987 = vmatpush1.bf16.xpose.msra.mxu0 0
      %988 = vmatprep.subr.bf16.mxu0 0
      %989 = vmatpush1.bf16.xpose.msra.mxu0 0
      %990 = vmatprep.subr.bf16.mxu0 0
      %991 = vmatpush1.bf16.xpose.msra.mxu0 0
      %992 = vmatprep.subr.bf16.mxu0 0
      %993 = vmatpush1.bf16.xpose.msra.mxu0 0
      %994 = vmatprep.subr.bf16.mxu0 0
      %995 = vmatpush1.bf16.xpose.msra.mxu0 %v978
      %996 = vmatprep.subr.bf16.mxu0 0
      %997 = vmatpush2.bf16.xpose.msra.mxu0 0
      %998 = vmatprep.subr.bf16.mxu0 0
      %999 = vmatpush2.bf16.xpose.msra.mxu0 0
      %1000 = vmatprep.subr.bf16.mxu0 0
      %1001 = vmatpush2.bf16.xpose.msra.mxu0 0
      %1002 = vmatprep.subr.bf16.mxu0 0
      %1003 = vmatpush2.bf16.xpose.msra.mxu0 0
      %1004 = vmatprep.subr.bf16.mxu0 0
      %1005 = vmatpush2.bf16.xpose.msra.mxu0 0
      %1006 = vmatprep.subr.bf16.mxu0 0
      %1007 = vmatpush2.bf16.xpose.msra.mxu0 0
      %1008 = vmatprep.subr.bf16.mxu0 0
      %1009 = vmatpush2.bf16.xpose.msra.mxu0 0
      %1010 = vmatprep.subr.bf16.mxu0 0
      %1011 = vmatpush2.bf16.xpose.msra.mxu0 0
      %1012 = vmatprep.mubr.bf16.mxu0 0
      %1013 = vmatmul.mubr.bf16.gmra.mxu0 %v975
      %v1014 = vpop.f32.mrf.mxu0
      %v1015 = vadd.f32 %v852, %v1014
      %v1016 = vpop.f32.mrf.mxu0
      %v1017 = vpop.f32.mrf.mxu0
      %v1018 = vpop.f32.mrf.mxu0
      %1019 = vdwg.mxu0
      %v1020 = vsel %vm904, %v1015, -inf
      %1021 = vmax.xlane.f32.xlu0 %v1020
      %v1022 = vpop.xlane.xlu0 %1021
      %v1023 = vsub.f32 %v1015, %v1022
      %v1024 = vmul.f32 %v1023, 1.442695
      %v1025 = vpow.pop %v1024
      %v1026 = vsel %vm904, %v1025, 0.0
      %1027 = vadd.xlane.f32.xlu0 %v1026
      %v1028 = vpop.xlane.xlu0 %1027
      %v1029 = vrcp.pop %v1028
      %v1030 = vmul.f32 %v1025, %v1029
      %v1031 = vpack.c.bf16 %v1030, %v1030
      %1032 = vrot.lane.b32.xlu0 %v847, 48
      %v1033 = vpop.permute.xlu0 %1032
      %v1035 = vsel %vm904, %v1031, 0
      %v1038 = vsel %vm922, %v1033, 0
      %1040 = vmatprep.subr.bf16.mxu0 0
      %1041 = vmatpush1.bf16.msra.mxu0 0
      %1042 = vmatprep.subr.bf16.mxu0 0
      %1043 = vmatpush1.bf16.msra.mxu0 0
      %1044 = vmatprep.subr.bf16.mxu0 0
      %1045 = vmatpush1.bf16.msra.mxu0 0
      %1046 = vmatprep.subr.bf16.mxu0 0
      %1047 = vmatpush1.bf16.msra.mxu0 0
      %1048 = vmatprep.subr.bf16.mxu0 0
      %1049 = vmatpush1.bf16.msra.mxu0 0
      %1050 = vmatprep.subr.bf16.mxu0 0
      %1051 = vmatpush1.bf16.msra.mxu0 0
      %1052 = vmatprep.subr.bf16.mxu0 0
      %1053 = vmatpush1.bf16.msra.mxu0 0
      %1054 = vmatprep.subr.bf16.mxu0 0
      %1055 = vmatpush1.bf16.msra.mxu0 %v1038
      %1056 = vmatprep.subr.bf16.mxu0 0
      %1057 = vmatpush2.bf16.msra.mxu0 0
      %1058 = vmatprep.subr.bf16.mxu0 0
      %1059 = vmatpush2.bf16.msra.mxu0 0
      %1060 = vmatprep.subr.bf16.mxu0 0
      %1061 = vmatpush2.bf16.msra.mxu0 0
      %1062 = vmatprep.subr.bf16.mxu0 0
      %1063 = vmatpush2.bf16.msra.mxu0 0
      %1064 = vmatprep.subr.bf16.mxu0 0
      %1065 = vmatpush2.bf16.msra.mxu0 0
      %1066 = vmatprep.subr.bf16.mxu0 0
      %1067 = vmatpush2.bf16.msra.mxu0 0
      %1068 = vmatprep.subr.bf16.mxu0 0
      %1069 = vmatpush2.bf16.msra.mxu0 0
      %1070 = vmatprep.subr.bf16.mxu0 0
      %1071 = vmatpush2.bf16.msra.mxu0 0
      %1072 = vmatprep.mubr.bf16.mxu0 0
      %1073 = vmatmul.mubr.bf16.gmra.mxu0 %v1035
      %v1074 = vpop.f32.mrf.mxu0
      %v1075 = vadd.f32 0.0, %v1074
      %v1076 = vpop.f32.mrf.mxu0
      %v1077 = vpop.f32.mrf.mxu0
      %v1078 = vpop.f32.mrf.mxu0
      %1079 = vdwg.mxu0
      %v1080 = vpack.c.bf16 %v1075, %v1075
      %v1082 = vunpack.c.l.b16 %v1080
      %v1083 = vpack.c.b16 %v1082, %v1082
      %1084 = vrot.lane.b32.xlu0 %v1083, 16
      %v1085 = vpop.permute.xlu0 %1084
      %vm1087 = vcmask 257152
      %1088 = vst.msk [vmem:[#allocation3] sm:$0xf] %vm1087, %v1085
      %v1089 = vld [vmem:[#allocation3] sm:$0xf]
      %v1090 = vld [vmem:[%s699] sm:$0xf]
      %v1091 = vld [vmem:[%s699 + $0x4] sm:$0xf]
      %v1092 = vld [vmem:[%s699 + $0x8] sm:$0xf]
      %v1093 = vld [vmem:[%s699 + $0xc] sm:$0xf]
      %v1094 = vld [vmem:[%s702] sm:$0x1]
      %v1096 = vlaneseq
      %v1097 = vshrl.u32 %v1096, 7
      %v1098 = vsub.s32 0, %v1097
      %v1099 = vrot.slane %v1094, %v1098
      %v1105 = vunpack.c.l.b16 %v1090
      %v1106 = vunpack.c.l.b16 %v1091
      %v1107 = vunpack.c.l.b16 %v1092
      %v1108 = vunpack.c.l.b16 %v1093
      %v1109 = vpack.c.b16 %v1106, %v1105
      %v1110 = vpack.c.b16 %v1108, %v1107
      %v1114 = vsel %vm800, %v1089, 0
      %1116 = vmatprep.subr.bf16.mxu0 0
      %1117 = vmatpush1.bf16.msra.mxu0 0
      %1118 = vmatprep.subr.bf16.mxu0 0
      %1119 = vmatpush1.bf16.msra.mxu0 0
      %1120 = vmatprep.subr.bf16.mxu0 0
      %1121 = vmatpush1.bf16.msra.mxu0 0
      %1122 = vmatprep.subr.bf16.mxu0 0
      %1123 = vmatpush1.bf16.msra.mxu0 0
      %1124 = vmatprep.subr.bf16.mxu0 0
      %1125 = vmatpush1.bf16.msra.mxu0 0
      %1126 = vmatprep.subr.bf16.mxu0 0
      %1127 = vmatpush1.bf16.msra.mxu0 0
      %1128 = vmatprep.subr.bf16.mxu0 0
      %1129 = vmatpush1.bf16.msra.mxu0 %v1110
      %1130 = vmatprep.subr.bf16.mxu0 0
      %1131 = vmatpush1.bf16.msra.mxu0 %v1109
      %1132 = vmatprep.subr.bf16.mxu0 0
      %1133 = vmatpush2.bf16.msra.mxu0 0
      %1134 = vmatprep.subr.bf16.mxu0 0
      %1135 = vmatpush2.bf16.msra.mxu0 0
      %1136 = vmatprep.subr.bf16.mxu0 0
      %1137 = vmatpush2.bf16.msra.mxu0 0
      %1138 = vmatprep.subr.bf16.mxu0 0
      %1139 = vmatpush2.bf16.msra.mxu0 0
      %1140 = vmatprep.subr.bf16.mxu0 0
      %1141 = vmatpush2.bf16.msra.mxu0 0
      %1142 = vmatprep.subr.bf16.mxu0 0
      %1143 = vmatpush2.bf16.msra.mxu0 0
      %1144 = vmatprep.subr.bf16.mxu0 0
      %1145 = vmatpush2.bf16.msra.mxu0 0
      %1146 = vmatprep.subr.bf16.mxu0 0
      %1147 = vmatpush2.bf16.msra.mxu0 0
      %1148 = vmatprep.mubr.bf16.mxu0 0
      %1149 = vmatmul.mubr.bf16.gmra.mxu0 %v1114
      %v1150 = vpop.f32.mrf.mxu0
      %v1151 = vadd.f32 %v1099, %v1150
      %v1152 = vpop.f32.mrf.mxu0
      %v1153 = vpop.f32.mrf.mxu0
      %v1154 = vpop.f32.mrf.mxu0
      %1155 = vdwg.mxu0
      %v1156 = vadd.f32 %v1151, %v776
      %v1157 = vsel %vm800, %v1156, 0.0
      %1158 = vadd.xlane.f32.xlu0 %v1157
      %v1159 = vpop.xlane.xlu0 %1158
      %v1160 = vrcp.pop 32.0
      %v1161 = vmul.f32 %v1159, %v1160
      %v1162 = vsub.f32 %v1156, %v1161
      %v1163 = vmul.f32 %v1162, %v1162
      %v1164 = vsel %vm800, %v1163, 0.0
      %1165 = vadd.xlane.f32.xlu0 %v1164
      %v1166 = vpop.xlane.xlu0 %1165
      %v1167 = vmul.f32 %v1166, %v1160
      %v1168 = vadd.f32 %v1167, 1e-12
      %v1169 = vrsqrt.pop %v1168
      %v1170 = vmul.f32 %v1162, %v1169
      %v1171 = vld [vmem:[%s705] sm:$0x1]
      %v1173 = vlaneseq
      %v1174 = vshrl.u32 %v1173, 7
      %v1175 = vsub.s32 0, %v1174
      %v1176 = vrot.slane %v1171, %v1175
      %v1178 = vmul.f32 %v1170, %v1176
      %v1179 = vld [vmem:[%s708] sm:$0x1]
      %v1181 = vlaneseq
      %v1182 = vshrl.u32 %v1181, 7
      %v1183 = vsub.s32 0, %v1182
      %v1184 = vrot.slane %v1179, %v1183
      %v1186 = vadd.f32 %v1178, %v1184
      %v1187 = vpack.c.bf16 %v1186, %v1186
      %v1188 = vld [vmem:[%s713] sm:$0xf]
      %v1189 = vld [vmem:[%s713 + $0x4] sm:$0xf]
      %v1190 = vld [vmem:[%s713 + $0x8] sm:$0xf]
      %v1191 = vld [vmem:[%s713 + $0xc] sm:$0xf]
      %v1192 = vld [vmem:[%s716] sm:$0x1]
      %v1194 = vlaneseq
      %v1195 = vshrl.u32 %v1194, 7
      %v1196 = vsub.s32 0, %v1195
      %v1197 = vrot.slane %v1192, %v1196
      %v1203 = vunpack.c.l.b16 %v1188
      %v1204 = vunpack.c.l.b16 %v1189
      %v1205 = vunpack.c.l.b16 %v1190
      %v1206 = vunpack.c.l.b16 %v1191
      %v1207 = vpack.c.b16 %v1204, %v1203
      %v1208 = vpack.c.b16 %v1206, %v1205
      %v1212 = vsel %vm800, %v1187, 0
      %1214 = vmatprep.subr.bf16.mxu0 0
      %1215 = vmatpush1.bf16.msra.mxu0 0
      %1216 = vmatprep.subr.bf16.mxu0 0
      %1217 = vmatpush1.bf16.msra.mxu0 0
      %1218 = vmatprep.subr.bf16.mxu0 0
      %1219 = vmatpush1.bf16.msra.mxu0 0
      %1220 = vmatprep.subr.bf16.mxu0 0
      %1221 = vmatpush1.bf16.msra.mxu0 0
      %1222 = vmatprep.subr.bf16.mxu0 0
      %1223 = vmatpush1.bf16.msra.mxu0 0
      %1224 = vmatprep.subr.bf16.mxu0 0
      %1225 = vmatpush1.bf16.msra.mxu0 0
      %1226 = vmatprep.subr.bf16.mxu0 0
      %1227 = vmatpush1.bf16.msra.mxu0 %v1208
      %1228 = vmatprep.subr.bf16.mxu0 0
      %1229 = vmatpush1.bf16.msra.mxu0 %v1207
      %1230 = vmatprep.subr.bf16.mxu0 0
      %1231 = vmatpush2.bf16.msra.mxu0 0
      %1232 = vmatprep.subr.bf16.mxu0 0
      %1233 = vmatpush2.bf16.msra.mxu0 0
      %1234 = vmatprep.subr.bf16.mxu0 0
      %1235 = vmatpush2.bf16.msra.mxu0 0
      %1236 = vmatprep.subr.bf16.mxu0 0
      %1237 = vmatpush2.bf16.msra.mxu0 0
      %1238 = vmatprep.subr.bf16.mxu0 0
      %1239 = vmatpush2.bf16.msra.mxu0 0
      %1240 = vmatprep.subr.bf16.mxu0 0
      %1241 = vmatpush2.bf16.msra.mxu0 0
      %1242 = vmatprep.subr.bf16.mxu0 0
      %1243 = vmatpush2.bf16.msra.mxu0 0
      %1244 = vmatprep.subr.bf16.mxu0 0
      %1245 = vmatpush2.bf16.msra.mxu0 0
      %1246 = vmatprep.mubr.bf16.mxu0 0
      %1247 = vmatmul.mubr.bf16.gmra.mxu0 %v1212
      %v1248 = vpop.f32.mrf.mxu0
      %v1249 = vadd.f32 %v1197, %v1248
      %v1250 = vpop.f32.mrf.mxu0
      %v1251 = vpop.f32.mrf.mxu0
      %v1252 = vpop.f32.mrf.mxu0
      %1253 = vdwg.mxu0
      %v1254 = vmul.f32 %v1249, %v1249
      %v1255 = vmul.f32 %v1249, %v1254
      %v1256 = vmul.f32 %v1255, 0.044715
      %v1257 = vadd.f32 %v1249, %v1256
      %v1258 = vmul.f32 %v1257, 0.7978846
      %v1259 = vtanh.pop %v1258
      %v1260 = vadd.f32 %v1259, 1.0
      %v1261 = vmul.f32 %v1260, 0.5
      %v1262 = vmul.f32 %v1249, %v1261
      %v1263 = vpack.c.bf16 %v1262, %v1262
      %v1264 = vld [vmem:[%s721] sm:$0xf]
      %v1265 = vld [vmem:[%s721 + $0x4] sm:$0xf]
      %v1266 = vld [vmem:[%s721 + $0x8] sm:$0xf]
      %v1267 = vld [vmem:[%s721 + $0xc] sm:$0xf]
      %v1268 = vld [vmem:[%s721 + $0x10] sm:$0xf]
      %v1269 = vld [vmem:[%s721 + $0x14] sm:$0xf]
      %v1270 = vld [vmem:[%s721 + $0x18] sm:$0xf]
      %v1271 = vld [vmem:[%s721 + $0x1c] sm:$0xf]
      %v1272 = vld [vmem:[%s724] sm:$0x1]
      %v1274 = vlaneseq
      %v1275 = vshrl.u32 %v1274, 7
      %v1276 = vsub.s32 0, %v1275
      %v1277 = vrot.slane %v1272, %v1276
      %v1287 = vunpack.c.l.b16 %v1264
      %v1288 = vunpack.c.l.b16 %v1265
      %v1289 = vunpack.c.l.b16 %v1266
      %v1290 = vunpack.c.l.b16 %v1267
      %v1291 = vunpack.c.l.b16 %v1268
      %v1292 = vunpack.c.l.b16 %v1269
      %v1293 = vunpack.c.l.b16 %v1270
      %v1294 = vunpack.c.l.b16 %v1271
      %v1295 = vpack.c.b16 %v1288, %v1287
      %v1296 = vpack.c.b16 %v1290, %v1289
      %v1297 = vpack.c.b16 %v1292, %v1291
      %v1298 = vpack.c.b16 %v1294, %v1293
      %vm1303 = vcmask 523264
      %v1305 = vsel %vm1303, %v1263, 0
      %1307 = vmatprep.subr.bf16.mxu0 0
      %1308 = vmatpush1.bf16.msra.mxu0 0
      %1309 = vmatprep.subr.bf16.mxu0 0
      %1310 = vmatpush1.bf16.msra.mxu0 0
      %1311 = vmatprep.subr.bf16.mxu0 0
      %1312 = vmatpush1.bf16.msra.mxu0 0
      %1313 = vmatprep.subr.bf16.mxu0 0
      %1314 = vmatpush1.bf16.msra.mxu0 0
      %1315 = vmatprep.subr.bf16.mxu0 0
      %1316 = vmatpush1.bf16.msra.mxu0 %v1298
      %1317 = vmatprep.subr.bf16.mxu0 0
      %1318 = vmatpush1.bf16.msra.mxu0 %v1297
      %1319 = vmatprep.subr.bf16.mxu0 0
      %1320 = vmatpush1.bf16.msra.mxu0 %v1296
      %1321 = vmatprep.subr.bf16.mxu0 0
      %1322 = vmatpush1.bf16.msra.mxu0 %v1295
      %1323 = vmatprep.subr.bf16.mxu0 0
      %1324 = vmatpush2.bf16.msra.mxu0 0
      %1325 = vmatprep.subr.bf16.mxu0 0
      %1326 = vmatpush2.bf16.msra.mxu0 0
      %1327 = vmatprep.subr.bf16.mxu0 0
      %1328 = vmatpush2.bf16.msra.mxu0 0
      %1329 = vmatprep.subr.bf16.mxu0 0
      %1330 = vmatpush2.bf16.msra.mxu0 0
      %1331 = vmatprep.subr.bf16.mxu0 0
      %1332 = vmatpush2.bf16.msra.mxu0 0
      %1333 = vmatprep.subr.bf16.mxu0 0
      %1334 = vmatpush2.bf16.msra.mxu0 0
      %1335 = vmatprep.subr.bf16.mxu0 0
      %1336 = vmatpush2.bf16.msra.mxu0 0
      %1337 = vmatprep.subr.bf16.mxu0 0
      %1338 = vmatpush2.bf16.msra.mxu0 0
      %1339 = vmatprep.mubr.bf16.mxu0 0
      %1340 = vmatmul.mubr.bf16.gmra.mxu0 %v1305
      %v1341 = vpop.f32.mrf.mxu0
      %v1342 = vadd.f32 %v1277, %v1341
      %v1343 = vpop.f32.mrf.mxu0
      %v1344 = vpop.f32.mrf.mxu0
      %v1345 = vpop.f32.mrf.mxu0
      %1346 = vdwg.mxu0
      %v1347 = vadd.f32 %v1342, %v1186
      %v1348 = vsel %vm800, %v1347, 0.0
      %1349 = vadd.xlane.f32.xlu0 %v1348
      %v1350 = vpop.xlane.xlu0 %1349
      %v1351 = vmul.f32 %v1350, %v1160
      %v1352 = vsub.f32 %v1347, %v1351
      %v1353 = vmul.f32 %v1352, %v1352
      %v1354 = vsel %vm800, %v1353, 0.0
      %1355 = vadd.xlane.f32.xlu0 %v1354
      %v1356 = vpop.xlane.xlu0 %1355
      %v1357 = vmul.f32 %v1356, %v1160
      %v1358 = vadd.f32 %v1357, 1e-12
      %v1359 = vrsqrt.pop %v1358
      %v1360 = vmul.f32 %v1352, %v1359
      %v1361 = vld [vmem:[%s727] sm:$0x1]
      %v1363 = vlaneseq
      %v1364 = vshrl.u32 %v1363, 7
      %v1365 = vsub.s32 0, %v1364
      %v1366 = vrot.slane %v1361, %v1365
      %v1368 = vmul.f32 %v1360, %v1366
      %v1369 = vld [vmem:[%s730] sm:$0x1]
      %v1371 = vlaneseq
      %v1372 = vshrl.u32 %v1371, 7
      %v1373 = vsub.s32 0, %v1372
      %v1374 = vrot.slane %v1369, %v1373
      %v1376 = vadd.f32 %v1368, %v1374
      %v1377 = vpack.c.bf16 %v1376, %v1376
      %vm1378 = vcmask 257024
      %1379 = vst.msk [vmem:[#allocation2] sm:$0xf] %vm1378, %v1377
      %p1380 = scmp.eq.s32.totalorder %s32, 1
      // Predicated region
      $region89: #{dpr_question_encoder_forward.1} parent=83 // pred_check
        %p1381 = pneg %p1380
      $region90: #{dpr_question_encoder_forward.1} parent=83 // pred_check_branch
        %1383 = sbr.rel (%p1381) target = $region92
      $region91: #{dpr_question_encoder_forward.1} parent=83 // pred_region
        %1384 = vst.msk [vmem:[%s734] sm:$0xff] %vm800, %v1376
      $region92: #{dpr_question_encoder_forward.1} parent=83 // pred_fallthru
        _
      %p1385 = scmp.lt.s32.totalorder %s31, 1
      %s1386 = scalar_select %p1385, %s31, 1
      %s1387 = smul.addr %s1386, 8
      %s1388 = scalar_lea.vmem %s16, %s1387
      // Predicated region
      $region93: #{dpr_question_encoder_forward.1} parent=83 // pred_check
        %p1389 = pneg %p463
      $region94: #{dpr_question_encoder_forward.1} parent=83 // pred_check_branch
        %1391 = sbr.rel (%p1389) target = $region96
      $region95: #{dpr_question_encoder_forward.1} parent=83 // pred_region
        _
      $region96: #{dpr_question_encoder_forward.1} parent=83 // pred_fallthru
        _
    $region84: #{dpr_question_encoder_forward.1} parent=5 // pred_fallthru
      _
    %p1392 = scmp.le.s32.totalorder 2, %s22
    // Predicated region
    $region97: #{dpr_question_encoder_forward.1} parent=5 // pred_check
      %p1393 = pneg %p1392
    $region98: #{dpr_question_encoder_forward.1} parent=5 // pred_check_branch
      %1395 = sbr.rel (%p1393) target = $region100
    $region99: #{dpr_question_encoder_forward.1} parent=5 // pred_region
      %s1396 = ssub.s32 %s22, 2
      // Predicated region
      $region101: #{dpr_question_encoder_forward.1} parent=99 // pred_check
        %p1397 = pneg %p469
      $region102: #{dpr_question_encoder_forward.1} parent=99 // pred_check_branch
        %1399 = sbr.rel (%p1397) target = $region104
      $region103: #{dpr_question_encoder_forward.1} parent=99 // pred_region
        %p1400 = scmp.lt.s32.totalorder %s33, 1
        %s1401 = scalar_select %p1400, %s33, 1
        %s1402 = smul.addr %s1401, 8
        %s1403 = scalar_lea.vmem %s16, %s1402
      $region104: #{dpr_question_encoder_forward.1} parent=99 // pred_fallthru
        _
    $region100: #{dpr_question_encoder_forward.1} parent=5 // pred_fallthru
      _
  $region6: #{dpr_question_encoder_forward.1} parent=0 // loop_footer
    %s26 = sadd.s32 1, %s22
  $region7: #{dpr_question_encoder_forward.1} parent=0 // loop_footer_branch
    %21 = sbr.rel target = $region3
  $region8: #{dpr_question_encoder_forward.1} parent=0 // loop_exit
    _

</llo_original>
